<compile_context>
chip_gen: v6e
topology: v6e:2x2x1
jax: 0.10.0
libtpu: 0.0.40
codegen_flags: <defaults>
</compile_context>

<pallas_src>
import functools

import jax
import jax.numpy as jnp
import numpy as np
from jax.experimental import pallas as pl
from jax.experimental.pallas import tpu as pltpu


def basic_block_kernel(x_ref, t1_ref, t2_ref, b1_ref, b2_ref, out_ref, *, H, WC):
    # x_ref  : (M, W*C)        bf16, M = G*H lane-dense activation rows
    # t*_ref : (W*C, 3*W*C)    bf16 concatenated block-Toeplitz conv weights:
    #            cols [0:WC]    kernel row kh=0 (pairs with input row m-1)
    #            cols [WC:2WC]  kh=1 (center)
    #            cols [2WC:]    kh=2 (pairs with input row m+1)
    # b*_ref : (1, W*C)        f32 folded BN bias
    # out_ref: (M, W*C)        f32
    M = x_ref.shape[0]
    x = x_ref[...]

    # Per-image boundary masks: m % H == 0 is a top row, == H-1 a bottom row.
    row_in_img = jax.lax.broadcasted_iota(jnp.int32, (M, 1), 0) % H
    not_top = row_in_img != 0
    not_bot = row_in_img != (H - 1)

    def conv_bn(a, t_ref, b_ref):
        # One wide MXU matmul covers all three kernel rows (f32 accumulation).
        y = jnp.dot(a, t_ref[...], preferred_element_type=jnp.float32)   # (M, 3*WC)
        acc = b_ref[...] + y[:, WC:2 * WC]                               # center tap
        # kh=0: output row m uses input row m-1 -> roll down, zero image-top rows
        acc = acc + jnp.where(not_top,
                              pltpu.roll(y[:, :WC], shift=1, axis=0), 0.0)
        # kh=2: output row m uses input row m+1 -> roll up, zero image-bottom rows
        acc = acc + jnp.where(not_bot,
                              pltpu.roll(y[:, 2 * WC:], shift=M - 1, axis=0), 0.0)
        return acc

    mid = jnp.maximum(conv_bn(x, t1_ref, b1_ref), 0.0)          # conv1 + bn1 + relu
    out = conv_bn(mid.astype(jnp.bfloat16), t2_ref, b2_ref)     # conv2 + bn2
    out = out + x.astype(jnp.float32)                           # residual
    out_ref[...] = jnp.maximum(out, 0.0)                        # final relu


def _toeplitz_weights(w_hwio, scale, W, dtype=jnp.bfloat16):
    """(3,3,Cin,Cout) HWIO weights + folded BN scale ->
       (W*Cin, 3*W*Cout): the three per-kernel-row block-Toeplitz matrices
       concatenated along the output axis (one MXU matmul per conv)."""
    KH, KW, Cin, Cout = w_hwio.shape
    w = w_hwio.astype(jnp.float32) * scale.astype(jnp.float32)[None, None, None, :]
    wi = jnp.arange(W)[:, None]          # input column index
    wo = jnp.arange(W)[None, :]          # output column index
    kw = wi - wo + 1                     # which width tap connects wi -> wo
    valid = ((kw >= 0) & (kw < KW)).astype(jnp.float32)
    kw_c = jnp.clip(kw, 0, KW - 1)
    # blocks[kh, wi, wo, ci, co] = w[kh, wi-wo+1, ci, co] if |wi-wo| <= 1 else 0
    blocks = w[:, kw_c] * valid[None, :, :, None, None]
    t = blocks.transpose(0, 1, 3, 2, 4).reshape(KH, W * Cin, W * Cout)
    t_cat = jnp.concatenate([t[0], t[1], t[2]], axis=1)          # (W*Cin, 3*W*Cout)
    return t_cat.astype(dtype)


def _pick_group(B, H, target_rows=512):
    """Images per grid step: aim for M = G*H near target_rows, keep >= 2 grid
    steps when the batch allows (megacore / pipelining), and force M % 8 == 0
    whenever the grid has more than one step."""
    g_cap = B if B < 2 else B // 2                 # leave >= 2 grid steps if possible
    G = max(1, min(g_cap, max(1, target_rows // H)))
    while G > 1 and (B % G or ((B // G) > 1 and (G * H) % 8)):
        G -= 1
    if B % G:
        G = 1
    if (B // G) > 1 and (G * H) % 8:
        G = B                                      # single step: block == full array is legal
    return G


def basic_block(x_nhwc, w1_hwio, w2_hwio, scale1, bias1, scale2, bias2,
                block_batch=None):
    B, H, W, C = x_nhwc.shape
    WC = W * C
    assert WC % 128 == 0, "W*C must be a multiple of 128 (pad/tile otherwise)"

    G = block_batch if block_batch is not None else _pick_group(B, H)
    G = max(1, min(G, B))
    while B % G:
        G -= 1
    M = G * H

    x_flat = x_nhwc.reshape(B * H, WC).astype(jnp.bfloat16)      # lane-dense bf16
    t1 = _toeplitz_weights(w1_hwio, scale1, W)                   # (WC, 3*WC) bf16
    t2 = _toeplitz_weights(w2_hwio, scale2, W)
    b1 = jnp.tile(bias1.astype(jnp.float32), W).reshape(1, WC)
    b2 = jnp.tile(bias2.astype(jnp.float32), W).reshape(1, WC)

    # VMEM budget: 2 resident bf16 weight slabs (x2 headroom), double-buffered
    # activation/output tiles, and f32 intermediates.
    weight_bytes = 2 * WC * (3 * WC) * 2
    act_bytes = 2 * M * WC * (2 + 4)
    scratch_bytes = 12 * M * (3 * WC) * 4
    vmem_limit = int(min(100 << 20,
                         max(32 << 20,
                             2 * weight_bytes + act_bytes + scratch_bytes + (4 << 20))))

    kernel = functools.partial(basic_block_kernel, H=H, WC=WC)

    out_flat = pl.pallas_call(
        kernel,
        out_shape=jax.ShapeDtypeStruct((B * H, WC), jnp.float32),
        grid_spec=pltpu.PrefetchScalarGridSpec(
            num_scalar_prefetch=0,
            grid=(B // G,),
            in_specs=[
                pl.BlockSpec((M, WC), lambda b: (b, 0)),             # activations
                pl.BlockSpec((WC, 3 * WC), lambda b: (0, 0)),        # T1 (resident)
                pl.BlockSpec((WC, 3 * WC), lambda b: (0, 0)),        # T2 (resident)
                pl.BlockSpec((1, WC), lambda b: (0, 0)),             # bias1
                pl.BlockSpec((1, WC), lambda b: (0, 0)),             # bias2
            ],
            out_specs=pl.BlockSpec((M, WC), lambda b: (b, 0)),
        ),
        compiler_params=pltpu.CompilerParams(
            dimension_semantics=("parallel",),                       # batch independent
            vmem_limit_bytes=vmem_limit),
    )(x_flat, t1, t2, b1, b2)

    return out_flat.reshape(B, H, W, C)


def _reference(x_nhwc, w1_hwio, w2_hwio, s1, b1, s2, b2):
    """Pure-JAX f32 reference for the same forward pass (NHWC)."""
    def conv3x3(x, w):
        return jax.lax.conv_general_dilated(
            x, w, window_strides=(1, 1), padding="SAME",
            dimension_numbers=("NHWC", "HWIO", "NHWC"))
    out = conv3x3(x_nhwc, w1_hwio)
    out = jnp.maximum(out * s1 + b1, 0.0)
    out = conv3x3(out, w2_hwio)
    out = out * s2 + b2
    return jnp.maximum(out + x_nhwc, 0.0)


if __name__ == "__main__":
    B, C, Hs, Ws = 2, 16, 16, 16   # inplanes = planes = 16, stride = 1
    key = jax.random.PRNGKey(0)
    kx, kw1, kw2 = jax.random.split(key, 3)

    # input in PyTorch NCHW convention, converted to NHWC for the kernel
    x_nchw = jax.random.normal(kx, (B, C, Hs, Ws), dtype=jnp.float32)
    x_nhwc = jnp.transpose(x_nchw, (0, 2, 3, 1))

    # conv weights: PyTorch (Cout, Cin, 3, 3) -> HWIO (3, 3, Cin, Cout)
    w1_oihw = jax.random.normal(kw1, (C, C, 3, 3), dtype=jnp.float32) * 0.1
    w2_oihw = jax.random.normal(kw2, (C, C, 3, 3), dtype=jnp.float32) * 0.1
    w1_hwio = jnp.transpose(w1_oihw, (2, 3, 1, 0))
    w2_hwio = jnp.transpose(w2_oihw, (2, 3, 1, 0))

    # deterministic BatchNorm parameters (eval mode), folded to scale/bias
    eps = 1e-5
    gamma1 = 1.0 + 0.05 * jnp.arange(C, dtype=jnp.float32)
    beta1 = 0.01 * jnp.arange(C, dtype=jnp.float32)
    mean1 = 0.02 * jnp.arange(C, dtype=jnp.float32)
    var1 = 1.0 + 0.03 * jnp.arange(C, dtype=jnp.float32)
    gamma2 = 1.0 - 0.02 * jnp.arange(C, dtype=jnp.float32)
    beta2 = -0.01 * jnp.arange(C, dtype=jnp.float32)
    mean2 = -0.015 * jnp.arange(C, dtype=jnp.float32)
    var2 = 1.0 + 0.04 * jnp.arange(C, dtype=jnp.float32)

    scale1 = gamma1 / jnp.sqrt(var1 + eps)
    bias1 = beta1 - mean1 * scale1
    scale2 = gamma2 / jnp.sqrt(var2 + eps)
    bias2 = beta2 - mean2 * scale2

    out = basic_block(x_nhwc, w1_hwio, w2_hwio, scale1, bias1, scale2, bias2)
    out = jax.block_until_ready(out)

    ref = _reference(x_nhwc, w1_hwio, w2_hwio, scale1, bias1, scale2, bias2)
    ref = jax.block_until_ready(ref)
    # bf16 activations/weights with f32 accumulation -> loosened tolerance
    np.testing.assert_allclose(np.asarray(out), np.asarray(ref),
                               rtol=5e-2, atol=5e-2)
    print("KERNEL_OK")
</pallas_src>

<mosaic_0001>
module attributes {stable_mosaic.version = 11 : i64} {
  func.func @basic_block_kernel(%arg0: i32, %arg1: memref<16x256xbf16, #tpu.memory_space<vmem>>, %arg2: memref<256x768xbf16, #tpu.memory_space<vmem>>, %arg3: memref<256x768xbf16, #tpu.memory_space<vmem>>, %arg4: memref<1x256xf32, #tpu.memory_space<vmem>>, %arg5: memref<1x256xf32, #tpu.memory_space<vmem>>, %arg6: memref<16x256xf32, #tpu.memory_space<vmem>>) attributes {dimension_semantics = [#tpu.dimension_semantics<parallel>], iteration_bounds = array<i64: 2>, scalar_prefetch = 0 : i64, scratch_operands = 0 : i64, tpu.core_type = #tpu.core_type<tc>, window_params = [{transform_indices = @transform_0, window_bounds = array<i64: 16, 256>}, {pipeline_mode = #tpu.pipeline_mode<synchronous>, transform_indices = @transform_1, window_bounds = array<i64: 256, 768>}, {pipeline_mode = #tpu.pipeline_mode<synchronous>, transform_indices = @transform_2, window_bounds = array<i64: 256, 768>}, {pipeline_mode = #tpu.pipeline_mode<synchronous>, transform_indices = @transform_3, window_bounds = array<i64: 1, 256>}, {pipeline_mode = #tpu.pipeline_mode<synchronous>, transform_indices = @transform_4, window_bounds = array<i64: 1, 256>}, {transform_indices = @transform_5, window_bounds = array<i64: 16, 256>}]} {
    %c0 = arith.constant 0 : index
    %c0_0 = arith.constant 0 : index
    %0 = vector.load %arg1[%c0, %c0_0] : memref<16x256xbf16, #tpu.memory_space<vmem>>, vector<16x256xbf16>
    %1 = tpu.iota {dimensions = array<i32: 0>} : vector<16x1xi32>
    %c16_i32 = arith.constant 16 : i32
    %c0_i32 = arith.constant 0 : i32
    %2 = arith.cmpi eq, %c16_i32, %c0_i32 : i32
    %c1_i32 = arith.constant 1 : i32
    %3 = arith.select %2, %c1_i32, %c16_i32 : i32
    %4 = vector.broadcast %3 : i32 to vector<16x1xi32>
    %5 = arith.remsi %1, %4 : vector<16x1xi32>
    %c0_i32_1 = arith.constant 0 : i32
    %6 = vector.broadcast %c0_i32_1 : i32 to vector<16x1xi32>
    %7 = arith.cmpi ne, %5, %6 : vector<16x1xi32>
    %c0_i32_2 = arith.constant 0 : i32
    %8 = vector.broadcast %c0_i32_2 : i32 to vector<16x1xi32>
    %9 = arith.cmpi slt, %5, %8 : vector<16x1xi32>
    %c0_i32_3 = arith.constant 0 : i32
    %10 = arith.cmpi slt, %3, %c0_i32_3 : i32
    %11 = vector.broadcast %10 : i1 to vector<16x1xi1>
    %12 = vector.broadcast %11 : vector<16x1xi1> to vector<16x1xi1>
    %13 = arith.xori %9, %12 : vector<16x1xi1>
    %14 = arith.andi %13, %7 : vector<16x1xi1>
    %15 = vector.broadcast %3 : i32 to vector<16x1xi32>
    %16 = arith.addi %5, %15 : vector<16x1xi32>
    %17 = arith.select %14, %16, %5 : vector<16x1xi1>, vector<16x1xi32>
    %c0_i32_4 = arith.constant 0 : i32
    %18 = vector.broadcast %c0_i32_4 : i32 to vector<16x1xi32>
    %19 = arith.cmpi ne, %17, %18 : vector<16x1xi32>
    %c15_i32 = arith.constant 15 : i32
    %20 = vector.broadcast %c15_i32 : i32 to vector<16x1xi32>
    %21 = arith.cmpi ne, %17, %20 : vector<16x1xi32>
    %c0_5 = arith.constant 0 : index
    %c0_6 = arith.constant 0 : index
    %22 = vector.load %arg2[%c0_5, %c0_6] : memref<256x768xbf16, #tpu.memory_space<vmem>>, vector<256x768xbf16>
    %cst = arith.constant dense<0.000000e+00> : vector<16x768xf32>
    %23 = tpu.matmul %0, %22, %cst {dimension_numbers = #tpu.dot_dimension_numbers<[1], [0], [0], [1], [0, 0, 1, 1], [], []>} : vector<16x256xbf16>, vector<256x768xbf16>, vector<16x768xf32> -> vector<16x768xf32>
    %c0_7 = arith.constant 0 : index
    %c0_8 = arith.constant 0 : index
    %24 = vector.load %arg4[%c0_7, %c0_8] : memref<1x256xf32, #tpu.memory_space<vmem>>, vector<1x256xf32>
    %25 = vector.extract_strided_slice %23 {offsets = [0, 256], sizes = [16, 256], strides = [1, 1]} : vector<16x768xf32> to vector<16x256xf32>
    %26 = vector.broadcast %24 : vector<1x256xf32> to vector<16x256xf32>
    %27 = arith.addf %26, %25 : vector<16x256xf32>
    %28 = vector.extract_strided_slice %23 {offsets = [0, 0], sizes = [16, 256], strides = [1, 1]} : vector<16x768xf32> to vector<16x256xf32>
    %c1_i32_9 = arith.constant 1 : i32
    %29 = tpu.dynamic_rotate %28 by %c1_i32_9 dim 0 : vector<16x256xf32>, i32 -> vector<16x256xf32>
    %cst_10 = arith.constant 0.000000e+00 : f32
    %30 = vector.shape_cast %19 : vector<16x1xi1> to vector<16x1xi1>
    %31 = vector.broadcast %30 : vector<16x1xi1> to vector<16x256xi1>
    %32 = vector.broadcast %cst_10 : f32 to vector<16x256xf32>
    %33 = arith.select %31, %29, %32 : vector<16x256xi1>, vector<16x256xf32>
    %34 = arith.addf %27, %33 : vector<16x256xf32>
    %35 = vector.extract_strided_slice %23 {offsets = [0, 512], sizes = [16, 256], strides = [1, 1]} : vector<16x768xf32> to vector<16x256xf32>
    %c15_i32_11 = arith.constant 15 : i32
    %36 = tpu.dynamic_rotate %35 by %c15_i32_11 dim 0 : vector<16x256xf32>, i32 -> vector<16x256xf32>
    %cst_12 = arith.constant 0.000000e+00 : f32
    %37 = vector.shape_cast %21 : vector<16x1xi1> to vector<16x1xi1>
    %38 = vector.broadcast %37 : vector<16x1xi1> to vector<16x256xi1>
    %39 = vector.broadcast %cst_12 : f32 to vector<16x256xf32>
    %40 = arith.select %38, %36, %39 : vector<16x256xi1>, vector<16x256xf32>
    %41 = arith.addf %34, %40 : vector<16x256xf32>
    %cst_13 = arith.constant 0.000000e+00 : f32
    %42 = vector.broadcast %cst_13 : f32 to vector<16x256xf32>
    %43 = arith.maximumf %41, %42 : vector<16x256xf32>
    %44 = arith.truncf %43 : vector<16x256xf32> to vector<16x256xbf16>
    %c0_14 = arith.constant 0 : index
    %c0_15 = arith.constant 0 : index
    %45 = vector.load %arg3[%c0_14, %c0_15] : memref<256x768xbf16, #tpu.memory_space<vmem>>, vector<256x768xbf16>
    %cst_16 = arith.constant dense<0.000000e+00> : vector<16x768xf32>
    %46 = tpu.matmul %44, %45, %cst_16 {dimension_numbers = #tpu.dot_dimension_numbers<[1], [0], [0], [1], [0, 0, 1, 1], [], []>} : vector<16x256xbf16>, vector<256x768xbf16>, vector<16x768xf32> -> vector<16x768xf32>
    %c0_17 = arith.constant 0 : index
    %c0_18 = arith.constant 0 : index
    %47 = vector.load %arg5[%c0_17, %c0_18] : memref<1x256xf32, #tpu.memory_space<vmem>>, vector<1x256xf32>
    %48 = vector.extract_strided_slice %46 {offsets = [0, 256], sizes = [16, 256], strides = [1, 1]} : vector<16x768xf32> to vector<16x256xf32>
    %49 = vector.broadcast %47 : vector<1x256xf32> to vector<16x256xf32>
    %50 = arith.addf %49, %48 : vector<16x256xf32>
    %51 = vector.extract_strided_slice %46 {offsets = [0, 0], sizes = [16, 256], strides = [1, 1]} : vector<16x768xf32> to vector<16x256xf32>
    %c1_i32_19 = arith.constant 1 : i32
    %52 = tpu.dynamic_rotate %51 by %c1_i32_19 dim 0 : vector<16x256xf32>, i32 -> vector<16x256xf32>
    %cst_20 = arith.constant 0.000000e+00 : f32
    %53 = vector.shape_cast %19 : vector<16x1xi1> to vector<16x1xi1>
    %54 = vector.broadcast %53 : vector<16x1xi1> to vector<16x256xi1>
    %55 = vector.broadcast %cst_20 : f32 to vector<16x256xf32>
    %56 = arith.select %54, %52, %55 : vector<16x256xi1>, vector<16x256xf32>
    %57 = arith.addf %50, %56 : vector<16x256xf32>
    %58 = vector.extract_strided_slice %46 {offsets = [0, 512], sizes = [16, 256], strides = [1, 1]} : vector<16x768xf32> to vector<16x256xf32>
    %c15_i32_21 = arith.constant 15 : i32
    %59 = tpu.dynamic_rotate %58 by %c15_i32_21 dim 0 : vector<16x256xf32>, i32 -> vector<16x256xf32>
    %cst_22 = arith.constant 0.000000e+00 : f32
    %60 = vector.shape_cast %21 : vector<16x1xi1> to vector<16x1xi1>
    %61 = vector.broadcast %60 : vector<16x1xi1> to vector<16x256xi1>
    %62 = vector.broadcast %cst_22 : f32 to vector<16x256xf32>
    %63 = arith.select %61, %59, %62 : vector<16x256xi1>, vector<16x256xf32>
    %64 = arith.addf %57, %63 : vector<16x256xf32>
    %65 = arith.extf %0 : vector<16x256xbf16> to vector<16x256xf32>
    %66 = arith.addf %64, %65 : vector<16x256xf32>
    %cst_23 = arith.constant 0.000000e+00 : f32
    %67 = vector.broadcast %cst_23 : f32 to vector<16x256xf32>
    %68 = arith.maximumf %66, %67 : vector<16x256xf32>
    %c0_24 = arith.constant 0 : index
    %c0_25 = arith.constant 0 : index
    %69 = vector.load %arg6[%c0_24, %c0_25] : memref<16x256xf32, #tpu.memory_space<vmem>>, vector<16x256xf32>
    tpu.vector_store %arg6[%c0_24, %c0_25], %68 {strides = array<i32>} : memref<16x256xf32, #tpu.memory_space<vmem>>, vector<16x256xf32>,
    return
  }
  func.func @transform_0(%arg0: i32) -> (i32, i32) {
    %c0_i32 = arith.constant 0 : i32
    %c0_i32_0 = arith.constant 0 : i32
    return %arg0, %c0_i32 : i32, i32
  }
  func.func @transform_1(%arg0: i32) -> (i32, i32) {
    %c0_i32 = arith.constant 0 : i32
    %c0_i32_0 = arith.constant 0 : i32
    %c0_i32_1 = arith.constant 0 : i32
    return %c0_i32, %c0_i32_0 : i32, i32
  }
  func.func @transform_2(%arg0: i32) -> (i32, i32) {
    %c0_i32 = arith.constant 0 : i32
    %c0_i32_0 = arith.constant 0 : i32
    %c0_i32_1 = arith.constant 0 : i32
    return %c0_i32, %c0_i32_0 : i32, i32
  }
  func.func @transform_3(%arg0: i32) -> (i32, i32) {
    %c0_i32 = arith.constant 0 : i32
    %c0_i32_0 = arith.constant 0 : i32
    %c0_i32_1 = arith.constant 0 : i32
    return %c0_i32, %c0_i32_0 : i32, i32
  }
  func.func @transform_4(%arg0: i32) -> (i32, i32) {
    %c0_i32 = arith.constant 0 : i32
    %c0_i32_0 = arith.constant 0 : i32
    %c0_i32_1 = arith.constant 0 : i32
    return %c0_i32, %c0_i32_0 : i32, i32
  }
  func.func @transform_5(%arg0: i32) -> (i32, i32) {
    %c0_i32 = arith.constant 0 : i32
    %c0_i32_0 = arith.constant 0 : i32
    return %arg0, %c0_i32 : i32, i32
  }
}

</mosaic_0001>

<llo_original>
// kernel: tpu_custom_call.1
$region0: #{tpu_custom_call.1}
  #allocation0 [shape = 'u32[]', space=smem, size = 0x4, offset = 0x4, fixed_abs, tag = 'smem constant byte address 0x4 - core index']
  #allocation1 [shape = 'u32[144,128]{1,0:T(1,128)}', space=vmem, size = 0x12000, scoped, tag = 'internal scratch']
  %s0 = inlined_call_operand.hbm [shape: bf16[32,256], index: 0, kind: input, shape index: {}]
  %s1 = inlined_call_operand.hbm [shape: bf16[256,768], index: 1, kind: input, shape index: {}]
  %s2 = inlined_call_operand.hbm [shape: bf16[256,768], index: 2, kind: input, shape index: {}]
  %s3 = inlined_call_operand.vmem [shape: f32[1,256], index: 3, kind: input, shape index: {}]
  %s4 = inlined_call_operand.vmem [shape: f32[1,256], index: 4, kind: input, shape index: {}]
  %s5 = inlined_call_operand.hbm [shape: f32[32,256], index: 5, kind: output, shape index: {}]
  %s6 = sld [smem:[#allocation0]]
  $region65: #{tpu_custom_call.1} parent=0
    _
  %s8 = ssub.s32 1, %s6
  %s9 = scalar_select 0, %s8, %s6
  $region1: #{tpu_custom_call.1} parent=0
    #allocation2 [shape = 'u8[16384]{0}', space=vmem, size = 0x4000, scoped, tag = 'input window, operand 0']
    #allocation3 [shape = 's32[2]{0}', space=sflag, size = 0x8, scoped, tag = 'scoped memory for tpu_custom_call.1']
    #allocation4 [shape = 's32[2]{0}', space=sflag, size = 0x8, scoped, tag = 'scoped memory for tpu_custom_call.1']
    #allocation5 [shape = 'u8[393216]{0}', space=vmem, size = 0x60000, scoped, tag = 'input window, operand 1, single buffered']
    #allocation6 [shape = 's32[1]{0}', space=sflag, size = 0x4, scoped, tag = 'scoped memory for tpu_custom_call.1']
    #allocation7 [shape = 'u8[393216]{0}', space=vmem, size = 0x60000, scoped, tag = 'input window, operand 2, single buffered']
    #allocation8 [shape = 'u8[32768]{0}', space=vmem, size = 0x8000, scoped, tag = 'output window, operand 0']
    %10 = vsyncpa [#allocation3], 0
    %s11 = scalar_lea.sflag [#allocation3], 1
    %12 = vsyncpa %s11, 0
    %13 = vsyncpa [#allocation6], 0
    %14 = vsyncpa [#allocation4], 0
    %s15 = scalar_lea.sflag [#allocation4], 1
    %16 = vsyncpa %s15, 0
    loop: start=0, step=1, limit=4
    $region2: #{tpu_custom_call.1} parent=1 // loop_pre_header
      _
    $region3: #{tpu_custom_call.1} parent=1 // loop_header
      %s18 = sphi 0, %s22
      %p19 = scmp.ge.s32.totalorder %s18, 4
      %s28 = sphi 0, %s30
      %s31 = sphi 0, %s28
      %s32 = sphi 0, %s31
      %s48 = sphi 0, %s32
      %s52 = sphi 0, %s52
      %s54 = sphi 0, %s52
      %s55 = sphi 0, %s54
      %s69 = sphi 0, %s55
      %s73 = sphi 0, %s73
      %s75 = sphi 0, %s73
      %s76 = sphi 0, %s75
      %s90 = sphi 0, %s76
      %s94 = sphi 0, %s94
      %s96 = sphi 0, %s94
      %s97 = sphi 0, %s96
      %s111 = sphi 0, %s97
      %s115 = sphi 0, %s115
      %s117 = sphi 0, %s115
      %s118 = sphi 0, %s117
      %s132 = sphi 0, %s118
      %s138 = sphi 0, %s140
      %s141 = sphi 0, %s138
      %s142 = sphi 0, %s141
      %s158 = sphi 0, %s142
    $region4: #{tpu_custom_call.1} parent=1 // loop_header_branch
      %21 = sbr.rel (%p19) target = $region8
    $region5: #{tpu_custom_call.1} parent=1 // loop_body
      %s23 = ssub.s32 %s18, 1
      %s24 = ssub.s32 %s18, 2
      %s25 = sadd.s32 %s18, 1
      %s26 = ssub.s32 %s18, %s25
      %p27 = scmp.eq.s32.totalorder %s26, 0
      %s29 = sadd.s32 %s28, 1
      %s30 = scalar_select %p27, %s28, %s29
      %p33 = pneg %p27
      %p34 = scmp.eq.s32.totalorder %s18, 1
      %p35 = por %p33, %p34
      %p36 = scmp.ne.s32.totalorder %s28, %s31
      %p37 = scmp.eq.s32.totalorder %s18, 0
      %p38 = por %p36, %p37
      %p39 = scmp.ne.s32.totalorder %s28, %s31
      %p40 = scmp.eq.s32.totalorder %s23, 1
      %p41 = por %p39, %p40
      %p42 = scmp.ne.s32.totalorder %s31, %s32
      %p43 = scmp.eq.s32.totalorder %s23, 0
      %p44 = por %p42, %p43
      %p45 = scmp.ne.s32.totalorder %s31, %s32
      %p46 = scmp.eq.s32.totalorder %s24, 1
      %p47 = por %p45, %p46
      %p49 = scmp.ne.s32.totalorder %s32, %s48
      %p50 = scmp.eq.s32.totalorder %s24, 0
      %p51 = por %p49, %p50
      %s53 = sadd.s32 %s52, 1
      %p56 = scmp.eq.s32.totalorder %s18, 1
      %p57 = scmp.ne.s32.totalorder %s52, %s54
      %p58 = scmp.eq.s32.totalorder %s18, 0
      %p59 = por %p57, %p58
      %p60 = scmp.ne.s32.totalorder %s52, %s54
      %p61 = scmp.eq.s32.totalorder %s23, 1
      %p62 = por %p60, %p61
      %p63 = scmp.ne.s32.totalorder %s54, %s55
      %p64 = scmp.eq.s32.totalorder %s23, 0
      %p65 = por %p63, %p64
      %p66 = scmp.ne.s32.totalorder %s54, %s55
      %p67 = scmp.eq.s32.totalorder %s24, 1
      %p68 = por %p66, %p67
      %p70 = scmp.ne.s32.totalorder %s55, %s69
      %p71 = scmp.eq.s32.totalorder %s24, 0
      %p72 = por %p70, %p71
      %s74 = sadd.s32 %s73, 1
      %p77 = scmp.eq.s32.totalorder %s18, 1
      %p78 = scmp.ne.s32.totalorder %s73, %s75
      %p79 = scmp.eq.s32.totalorder %s18, 0
      %p80 = por %p78, %p79
      %p81 = scmp.ne.s32.totalorder %s73, %s75
      %p82 = scmp.eq.s32.totalorder %s23, 1
      %p83 = por %p81, %p82
      %p84 = scmp.ne.s32.totalorder %s75, %s76
      %p85 = scmp.eq.s32.totalorder %s23, 0
      %p86 = por %p84, %p85
      %p87 = scmp.ne.s32.totalorder %s75, %s76
      %p88 = scmp.eq.s32.totalorder %s24, 1
      %p89 = por %p87, %p88
      %p91 = scmp.ne.s32.totalorder %s76, %s90
      %p92 = scmp.eq.s32.totalorder %s24, 0
      %p93 = por %p91, %p92
      %s95 = sadd.s32 %s94, 1
      %p98 = scmp.eq.s32.totalorder %s18, 1
      %p99 = scmp.ne.s32.totalorder %s94, %s96
      %p100 = scmp.eq.s32.totalorder %s18, 0
      %p101 = por %p99, %p100
      %p102 = scmp.ne.s32.totalorder %s94, %s96
      %p103 = scmp.eq.s32.totalorder %s23, 1
      %p104 = por %p102, %p103
      %p105 = scmp.ne.s32.totalorder %s96, %s97
      %p106 = scmp.eq.s32.totalorder %s23, 0
      %p107 = por %p105, %p106
      %p108 = scmp.ne.s32.totalorder %s96, %s97
      %p109 = scmp.eq.s32.totalorder %s24, 1
      %p110 = por %p108, %p109
      %p112 = scmp.ne.s32.totalorder %s97, %s111
      %p113 = scmp.eq.s32.totalorder %s24, 0
      %p114 = por %p112, %p113
      %s116 = sadd.s32 %s115, 1
      %p119 = scmp.eq.s32.totalorder %s18, 1
      %p120 = scmp.ne.s32.totalorder %s115, %s117
      %p121 = scmp.eq.s32.totalorder %s18, 0
      %p122 = por %p120, %p121
      %p123 = scmp.ne.s32.totalorder %s115, %s117
      %p124 = scmp.eq.s32.totalorder %s23, 1
      %p125 = por %p123, %p124
      %p126 = scmp.ne.s32.totalorder %s117, %s118
      %p127 = scmp.eq.s32.totalorder %s23, 0
      %p128 = por %p126, %p127
      %p129 = scmp.ne.s32.totalorder %s117, %s118
      %p130 = scmp.eq.s32.totalorder %s24, 1
      %p131 = por %p129, %p130
      %p133 = scmp.ne.s32.totalorder %s118, %s132
      %p134 = scmp.eq.s32.totalorder %s24, 0
      %p135 = por %p133, %p134
      %s136 = ssub.s32 %s18, %s25
      %p137 = scmp.eq.s32.totalorder %s136, 0
      %s139 = sadd.s32 %s138, 1
      %s140 = scalar_select %p137, %s138, %s139
      %p143 = pneg %p137
      %p144 = scmp.eq.s32.totalorder %s18, 1
      %p145 = por %p143, %p144
      %p146 = scmp.ne.s32.totalorder %s138, %s141
      %p147 = scmp.eq.s32.totalorder %s18, 0
      %p148 = por %p146, %p147
      %p149 = scmp.ne.s32.totalorder %s138, %s141
      %p150 = scmp.eq.s32.totalorder %s23, 1
      %p151 = por %p149, %p150
      %p152 = scmp.ne.s32.totalorder %s141, %s142
      %p153 = scmp.eq.s32.totalorder %s23, 0
      %p154 = por %p152, %p153
      %p155 = scmp.ne.s32.totalorder %s141, %s142
      %p156 = scmp.eq.s32.totalorder %s24, 1
      %p157 = por %p155, %p156
      %p159 = scmp.ne.s32.totalorder %s142, %s158
      %p160 = scmp.eq.s32.totalorder %s24, 0
      %p161 = por %p159, %p160
      %p162 = scmp.le.s32.totalorder 1, %s18
      %p163 = scmp.lt.s32.totalorder %s18, 3
      %p164 = pnand %p162, %p163
      %p165 = pneg %p164
      // Predicated region
      $region9: #{tpu_custom_call.1} parent=5 // pred_check
        _
      $region10: #{tpu_custom_call.1} parent=5 // pred_check_branch
        %167 = sbr.rel (%p164) target = $region12
      $region11: #{tpu_custom_call.1} parent=5 // pred_region
        %s168 = ssub.s32 %s18, 1
        // Predicated region
        $region13: #{tpu_custom_call.1} parent=11 // pred_check
          %p169 = pneg %p65
        $region14: #{tpu_custom_call.1} parent=11 // pred_check_branch
          %171 = sbr.rel (%p169) target = $region16
        $region15: #{tpu_custom_call.1} parent=11 // pred_region
          %s173 = ssub.s32 12288, 12288
          %174 = vsyncadd [#allocation6], %s173
          %s175 = sshll.u32 [#allocation5], 4
          %s176 = int_to_ptr.vmem [resolvable:$true] %s175
          %181 = dma.hbm_to_vmem [thread:$0]  %s1, 12288, %s176, [#allocation6], 384, 384, 24
        $region16: #{tpu_custom_call.1} parent=11 // pred_fallthru
          _
        // Predicated region
        $region17: #{tpu_custom_call.1} parent=11 // pred_check
          %p182 = pneg %p86
        $region18: #{tpu_custom_call.1} parent=11 // pred_check_branch
          %184 = sbr.rel (%p182) target = $region20
        $region19: #{tpu_custom_call.1} parent=11 // pred_region
          %s186 = ssub.s32 12288, 12288
          %187 = vsyncadd [#allocation6], %s186
          %s188 = sshll.u32 [#allocation7], 4
          %s189 = int_to_ptr.vmem [resolvable:$true] %s188
          %194 = dma.hbm_to_vmem [thread:$0]  %s2, 12288, %s189, [#allocation6], 384, 384, 24
        $region20: #{tpu_custom_call.1} parent=11 // pred_fallthru
          _
        // Predicated region
        $region21: #{tpu_custom_call.1} parent=11 // pred_check
          %p195 = pneg %p107
        $region22: #{tpu_custom_call.1} parent=11 // pred_check_branch
          %197 = sbr.rel (%p195) target = $region24
        $region23: #{tpu_custom_call.1} parent=11 // pred_region
          _
        $region24: #{tpu_custom_call.1} parent=11 // pred_fallthru
          _
        // Predicated region
        $region25: #{tpu_custom_call.1} parent=11 // pred_check
          %p198 = pneg %p128
        $region26: #{tpu_custom_call.1} parent=11 // pred_check_branch
          %200 = sbr.rel (%p198) target = $region28
        $region27: #{tpu_custom_call.1} parent=11 // pred_region
          _
        $region28: #{tpu_custom_call.1} parent=11 // pred_fallthru
          _
      $region12: #{tpu_custom_call.1} parent=5 // pred_fallthru
        _
      %p201 = scmp.lt.s32.totalorder %s18, 2
      // Predicated region
      $region29: #{tpu_custom_call.1} parent=5 // pred_check
        %p202 = pneg %p201
      $region30: #{tpu_custom_call.1} parent=5 // pred_check_branch
        %204 = sbr.rel (%p202) target = $region32
      $region31: #{tpu_custom_call.1} parent=5 // pred_region
        // Predicated region
        $region33: #{tpu_custom_call.1} parent=31 // pred_check
          %p205 = pneg %p38
        $region34: #{tpu_custom_call.1} parent=31 // pred_check_branch
          %207 = sbr.rel (%p205) target = $region36
        $region35: #{tpu_custom_call.1} parent=31 // pred_region
          %s208 = sand.u32 %s28, 1
          %s209 = scalar_lea.sflag [#allocation3], %s208
          %s210 = sand.u32 %s28, 1
          %s211 = smul.addr %s210, 16
          %s212 = scalar_lea.vmem [#allocation2], %s211
          %s213 = smul.u32 2, %s18
          %s215 = ssub.s32 256, 256
          %216 = vsyncadd %s209, %s215
          %s217 = smul.addr %s213, 2
          %s218 = smul.addr %s217, 64
          %s219 = scalar_lea.hbm %s0, %s218
          %s220 = sshll.u32 %s212, 4
          %s221 = int_to_ptr.vmem [resolvable:$true] %s220
          %226 = dma.hbm_to_vmem [thread:$0]  %s219, 256, %s221, %s209, 128, 128, 8
        $region36: #{tpu_custom_call.1} parent=31 // pred_fallthru
          _
      $region32: #{tpu_custom_call.1} parent=5 // pred_fallthru
        _
      %p227 = scmp.le.s32.totalorder 1, %s18
      %p228 = scmp.lt.s32.totalorder %s18, 3
      %p229 = pnand %p227, %p228
      %p230 = pneg %p229
      // Predicated region
      $region37: #{tpu_custom_call.1} parent=5 // pred_check
        _
      $region38: #{tpu_custom_call.1} parent=5 // pred_check_branch
        %232 = sbr.rel (%p229) target = $region40
      $region39: #{tpu_custom_call.1} parent=5 // pred_region
        %s233 = ssub.s32 %s18, 1
        %s234 = sand.u32 %s31, 1
        %s235 = scalar_lea.sflag [#allocation3], %s234
        %s236 = sand.u32 %s31, 1
        %s237 = smul.addr %s236, 16
        %s238 = scalar_lea.vmem [#allocation2], %s237
        // Predicated region
        $region41: #{tpu_custom_call.1} parent=39 // pred_check
          %p239 = pneg %p44
        $region42: #{tpu_custom_call.1} parent=39 // pred_check_branch
          %241 = sbr.rel (%p239) target = $region44
        $region43: #{tpu_custom_call.1} parent=39 // pred_region
          %242 = dma.done %s235, 256
        $region44: #{tpu_custom_call.1} parent=39 // pred_fallthru
          _
        // Predicated region
        $region45: #{tpu_custom_call.1} parent=39 // pred_check
          %p243 = pneg %p65
        $region46: #{tpu_custom_call.1} parent=39 // pred_check_branch
          %245 = sbr.rel (%p243) target = $region48
        $region47: #{tpu_custom_call.1} parent=39 // pred_region
          %246 = dma.done [#allocation6], 12288
        $region48: #{tpu_custom_call.1} parent=39 // pred_fallthru
          _
        // Predicated region
        $region49: #{tpu_custom_call.1} parent=39 // pred_check
          %p247 = pneg %p86
        $region50: #{tpu_custom_call.1} parent=39 // pred_check_branch
          %249 = sbr.rel (%p247) target = $region52
        $region51: #{tpu_custom_call.1} parent=39 // pred_region
          %250 = dma.done [#allocation6], 12288
        $region52: #{tpu_custom_call.1} parent=39 // pred_fallthru
          _
        %s251 = sand.u32 %s31, 1
        %s252 = scalar_lea.sflag [#allocation3], %s251
        %s253 = sand.u32 %s31, 1
        %s254 = smul.addr %s253, 16
        %s255 = scalar_lea.vmem [#allocation2], %s254
        %p256 = pneg %p44
        %p257 = pneg %p41
        %p258 = pneg %p65
        %p259 = pneg %p62
        %p260 = pneg %p86
        %p261 = pneg %p83
        %p262 = pneg %p107
        %p263 = pneg %p104
        %p264 = pneg %p128
        %p265 = pneg %p125
        %p266 = pneg %p154
        %p267 = pneg %p151
        %s268 = sand.u32 %s141, 1
        %s269 = scalar_lea.sflag [#allocation4], %s268
        %s270 = sand.u32 %s141, 1
        %s271 = smul.addr %s270, 32
        %s272 = scalar_lea.vmem [#allocation8], %s271
        %s273 = smul.u32 2, %s23
        %s274 = smul.u32 2, %s23
        %v275 = vld [vmem:[%s238] sm:$0xff]
        %v276 = vld [vmem:[%s238 + $0x8] sm:$0xff]
        %v277 = vlaneseq
        %v278 = vshrl.u32 %v277, 7
        %v279 = vadd.s32 %v278, 8
        %vm280 = vcmp.lt.s32.totalorder %v278, 0
        %v281 = vsub.s32 0, %v278
        %v282 = vsel %vm280, %v281, %v278
        %v283 = vshrl.u32 %v282, 4
        %v284 = vand.u32 %v282, 15
        %v285 = vsub.s32 0, %v284
        %v286 = vsel %vm280, %v285, %v284
        %vm287 = vcmp.lt.s32.totalorder %v279, 0
        %v288 = vsub.s32 0, %v279
        %v289 = vsel %vm287, %v288, %v279
        %v290 = vshrl.u32 %v289, 4
        %v291 = vand.u32 %v289, 15
        %v292 = vsub.s32 0, %v291
        %v293 = vsel %vm287, %v292, %v291
        %vm294 = vcmp.ne.s32.totalorder %v286, 0
        %vm295 = vcmp.ne.s32.totalorder %v293, 0
        %vm296 = vcmp.lt.s32.totalorder %v286, 0
        %vm297 = vcmp.lt.s32.totalorder %v293, 0
        %vm298 = vmand %vm296, %vm294
        %vm299 = vmand %vm297, %vm295
        %v300 = vadd.s32 %v286, 16
        %v301 = vadd.s32 %v293, 16
        %v302 = vsel %vm298, %v300, %v286
        %v303 = vsel %vm299, %v301, %v293
        %vm304 = vcmp.ne.s32.totalorder %v302, 0
        %vm305 = vcmp.ne.s32.totalorder %v303, 0
        %vm306 = vcmp.ne.s32.totalorder %v302, 15
        %vm307 = vcmp.ne.s32.totalorder %v303, 15
        %v308 = vld [vmem:[#allocation5] sm:$0xff]
        %v309 = vld [vmem:[#allocation5 + $0x8] sm:$0xff]
        %v310 = vld [vmem:[#allocation5 + $0x10] sm:$0xff]
        %v311 = vld [vmem:[#allocation5 + $0x18] sm:$0xff]
        %v312 = vld [vmem:[#allocation5 + $0x20] sm:$0xff]
        %v313 = vld [vmem:[#allocation5 + $0x28] sm:$0xff]
        %v314 = vld [vmem:[#allocation5 + $0x30] sm:$0xff]
        %v315 = vld [vmem:[#allocation5 + $0x38] sm:$0xff]
        %v316 = vld [vmem:[#allocation5 + $0x40] sm:$0xff]
        %v317 = vld [vmem:[#allocation5 + $0x48] sm:$0xff]
        %v318 = vld [vmem:[#allocation5 + $0x50] sm:$0xff]
        %v319 = vld [vmem:[#allocation5 + $0x58] sm:$0xff]
        %v320 = vld [vmem:[#allocation5 + $0x60] sm:$0xff]
        %v321 = vld [vmem:[#allocation5 + $0x68] sm:$0xff]
        %v322 = vld [vmem:[#allocation5 + $0x70] sm:$0xff]
        %v323 = vld [vmem:[#allocation5 + $0x78] sm:$0xff]
        %v324 = vld [vmem:[#allocation5 + $0x80] sm:$0xff]
        %v325 = vld [vmem:[#allocation5 + $0x88] sm:$0xff]
        %v326 = vld [vmem:[#allocation5 + $0x90] sm:$0xff]
        %v327 = vld [vmem:[#allocation5 + $0x98] sm:$0xff]
        %v328 = vld [vmem:[#allocation5 + $0xa0] sm:$0xff]
        %v329 = vld [vmem:[#allocation5 + $0xa8] sm:$0xff]
        %v330 = vld [vmem:[#allocation5 + $0xb0] sm:$0xff]
        %v331 = vld [vmem:[#allocation5 + $0xb8] sm:$0xff]
        %v332 = vld [vmem:[#allocation5 + $0xc0] sm:$0xff]
        %v333 = vld [vmem:[#allocation5 + $0xc8] sm:$0xff]
        %v334 = vld [vmem:[#allocation5 + $0xd0] sm:$0xff]
        %v335 = vld [vmem:[#allocation5 + $0xd8] sm:$0xff]
        %v336 = vld [vmem:[#allocation5 + $0xe0] sm:$0xff]
        %v337 = vld [vmem:[#allocation5 + $0xe8] sm:$0xff]
        %v338 = vld [vmem:[#allocation5 + $0xf0] sm:$0xff]
        %v339 = vld [vmem:[#allocation5 + $0xf8] sm:$0xff]
        %v340 = vld [vmem:[#allocation5 + $0x100] sm:$0xff]
        %v341 = vld [vmem:[#allocation5 + $0x108] sm:$0xff]
        %v342 = vld [vmem:[#allocation5 + $0x110] sm:$0xff]
        %v343 = vld [vmem:[#allocation5 + $0x118] sm:$0xff]
        %v344 = vld [vmem:[#allocation5 + $0x120] sm:$0xff]
        %v345 = vld [vmem:[#allocation5 + $0x128] sm:$0xff]
        %v346 = vld [vmem:[#allocation5 + $0x130] sm:$0xff]
        %v347 = vld [vmem:[#allocation5 + $0x138] sm:$0xff]
        %v348 = vld [vmem:[#allocation5 + $0x140] sm:$0xff]
        %v349 = vld [vmem:[#allocation5 + $0x148] sm:$0xff]
        %v350 = vld [vmem:[#allocation5 + $0x150] sm:$0xff]
        %v351 = vld [vmem:[#allocation5 + $0x158] sm:$0xff]
        %v352 = vld [vmem:[#allocation5 + $0x160] sm:$0xff]
        %v353 = vld [vmem:[#allocation5 + $0x168] sm:$0xff]
        %v354 = vld [vmem:[#allocation5 + $0x170] sm:$0xff]
        %v355 = vld [vmem:[#allocation5 + $0x178] sm:$0xff]
        %v356 = vld [vmem:[#allocation5 + $0x180] sm:$0xff]
        %v357 = vld [vmem:[#allocation5 + $0x188] sm:$0xff]
        %v358 = vld [vmem:[#allocation5 + $0x190] sm:$0xff]
        %v359 = vld [vmem:[#allocation5 + $0x198] sm:$0xff]
        %v360 = vld [vmem:[#allocation5 + $0x1a0] sm:$0xff]
        %v361 = vld [vmem:[#allocation5 + $0x1a8] sm:$0xff]
        %v362 = vld [vmem:[#allocation5 + $0x1b0] sm:$0xff]
        %v363 = vld [vmem:[#allocation5 + $0x1b8] sm:$0xff]
        %v364 = vld [vmem:[#allocation5 + $0x1c0] sm:$0xff]
        %v365 = vld [vmem:[#allocation5 + $0x1c8] sm:$0xff]
        %v366 = vld [vmem:[#allocation5 + $0x1d0] sm:$0xff]
        %v367 = vld [vmem:[#allocation5 + $0x1d8] sm:$0xff]
        %v368 = vld [vmem:[#allocation5 + $0x1e0] sm:$0xff]
        %v369 = vld [vmem:[#allocation5 + $0x1e8] sm:$0xff]
        %v370 = vld [vmem:[#allocation5 + $0x1f0] sm:$0xff]
        %v371 = vld [vmem:[#allocation5 + $0x1f8] sm:$0xff]
        %v372 = vld [vmem:[#allocation5 + $0x200] sm:$0xff]
        %v373 = vld [vmem:[#allocation5 + $0x208] sm:$0xff]
        %v374 = vld [vmem:[#allocation5 + $0x210] sm:$0xff]
        %v375 = vld [vmem:[#allocation5 + $0x218] sm:$0xff]
        %v376 = vld [vmem:[#allocation5 + $0x220] sm:$0xff]
        %v377 = vld [vmem:[#allocation5 + $0x228] sm:$0xff]
        %v378 = vld [vmem:[#allocation5 + $0x230] sm:$0xff]
        %v379 = vld [vmem:[#allocation5 + $0x238] sm:$0xff]
        %v380 = vld [vmem:[#allocation5 + $0x240] sm:$0xff]
        %v381 = vld [vmem:[#allocation5 + $0x248] sm:$0xff]
        %v382 = vld [vmem:[#allocation5 + $0x250] sm:$0xff]
        %v383 = vld [vmem:[#allocation5 + $0x258] sm:$0xff]
        %v384 = vld [vmem:[#allocation5 + $0x260] sm:$0xff]
        %v385 = vld [vmem:[#allocation5 + $0x268] sm:$0xff]
        %v386 = vld [vmem:[#allocation5 + $0x270] sm:$0xff]
        %v387 = vld [vmem:[#allocation5 + $0x278] sm:$0xff]
        %v388 = vld [vmem:[#allocation5 + $0x280] sm:$0xff]
        %v389 = vld [vmem:[#allocation5 + $0x288] sm:$0xff]
        %v390 = vld [vmem:[#allocation5 + $0x290] sm:$0xff]
        %v391 = vld [vmem:[#allocation5 + $0x298] sm:$0xff]
        %v392 = vld [vmem:[#allocation5 + $0x2a0] sm:$0xff]
        %v393 = vld [vmem:[#allocation5 + $0x2a8] sm:$0xff]
        %v394 = vld [vmem:[#allocation5 + $0x2b0] sm:$0xff]
        %v395 = vld [vmem:[#allocation5 + $0x2b8] sm:$0xff]
        %v396 = vld [vmem:[#allocation5 + $0x2c0] sm:$0xff]
        %v397 = vld [vmem:[#allocation5 + $0x2c8] sm:$0xff]
        %v398 = vld [vmem:[#allocation5 + $0x2d0] sm:$0xff]
        %v399 = vld [vmem:[#allocation5 + $0x2d8] sm:$0xff]
        %v400 = vld [vmem:[#allocation5 + $0x2e0] sm:$0xff]
        %v401 = vld [vmem:[#allocation5 + $0x2e8] sm:$0xff]
        %v402 = vld [vmem:[#allocation5 + $0x2f0] sm:$0xff]
        %v403 = vld [vmem:[#allocation5 + $0x2f8] sm:$0xff]
        %v406 = vunpack.c.l.b16 %v275
        %v407 = vunpack.c.h.b16 %v275
        %v408 = vunpack.c.l.b16 %v276
        %v409 = vunpack.c.h.b16 %v276
        %v410 = vpack.c.b16 %v408, %v406
        %v411 = vpack.c.b16 %v409, %v407
        %v510 = vunpack.c.l.b16 %v308
        %v511 = vunpack.c.h.b16 %v308
        %v512 = vunpack.c.l.b16 %v309
        %v513 = vunpack.c.h.b16 %v309
        %v514 = vunpack.c.l.b16 %v310
        %v515 = vunpack.c.h.b16 %v310
        %v516 = vunpack.c.l.b16 %v311
        %v517 = vunpack.c.h.b16 %v311
        %v518 = vunpack.c.l.b16 %v312
        %v519 = vunpack.c.h.b16 %v312
        %v520 = vunpack.c.l.b16 %v313
        %v521 = vunpack.c.h.b16 %v313
        %v522 = vunpack.c.l.b16 %v314
        %v523 = vunpack.c.h.b16 %v314
        %v524 = vunpack.c.l.b16 %v315
        %v525 = vunpack.c.h.b16 %v315
        %v526 = vunpack.c.l.b16 %v316
        %v527 = vunpack.c.h.b16 %v316
        %v528 = vunpack.c.l.b16 %v317
        %v529 = vunpack.c.h.b16 %v317
        %v530 = vunpack.c.l.b16 %v318
        %v531 = vunpack.c.h.b16 %v318
        %v532 = vunpack.c.l.b16 %v319
        %v533 = vunpack.c.h.b16 %v319
        %v534 = vunpack.c.l.b16 %v320
        %v535 = vunpack.c.h.b16 %v320
        %v536 = vunpack.c.l.b16 %v321
        %v537 = vunpack.c.h.b16 %v321
        %v538 = vunpack.c.l.b16 %v322
        %v539 = vunpack.c.h.b16 %v322
        %v540 = vunpack.c.l.b16 %v323
        %v541 = vunpack.c.h.b16 %v323
        %v542 = vunpack.c.l.b16 %v324
        %v543 = vunpack.c.h.b16 %v324
        %v544 = vunpack.c.l.b16 %v325
        %v545 = vunpack.c.h.b16 %v325
        %v546 = vunpack.c.l.b16 %v326
        %v547 = vunpack.c.h.b16 %v326
        %v548 = vunpack.c.l.b16 %v327
        %v549 = vunpack.c.h.b16 %v327
        %v550 = vunpack.c.l.b16 %v328
        %v551 = vunpack.c.h.b16 %v328
        %v552 = vunpack.c.l.b16 %v329
        %v553 = vunpack.c.h.b16 %v329
        %v554 = vunpack.c.l.b16 %v330
        %v555 = vunpack.c.h.b16 %v330
        %v556 = vunpack.c.l.b16 %v331
        %v557 = vunpack.c.h.b16 %v331
        %v558 = vunpack.c.l.b16 %v332
        %v559 = vunpack.c.h.b16 %v332
        %v560 = vunpack.c.l.b16 %v333
        %v561 = vunpack.c.h.b16 %v333
        %v562 = vunpack.c.l.b16 %v334
        %v563 = vunpack.c.h.b16 %v334
        %v564 = vunpack.c.l.b16 %v335
        %v565 = vunpack.c.h.b16 %v335
        %v566 = vunpack.c.l.b16 %v336
        %v567 = vunpack.c.h.b16 %v336
        %v568 = vunpack.c.l.b16 %v337
        %v569 = vunpack.c.h.b16 %v337
        %v570 = vunpack.c.l.b16 %v338
        %v571 = vunpack.c.h.b16 %v338
        %v572 = vunpack.c.l.b16 %v339
        %v573 = vunpack.c.h.b16 %v339
        %v574 = vunpack.c.l.b16 %v340
        %v575 = vunpack.c.h.b16 %v340
        %v576 = vunpack.c.l.b16 %v341
        %v577 = vunpack.c.h.b16 %v341
        %v578 = vunpack.c.l.b16 %v342
        %v579 = vunpack.c.h.b16 %v342
        %v580 = vunpack.c.l.b16 %v343
        %v581 = vunpack.c.h.b16 %v343
        %v582 = vunpack.c.l.b16 %v344
        %v583 = vunpack.c.h.b16 %v344
        %v584 = vunpack.c.l.b16 %v345
        %v585 = vunpack.c.h.b16 %v345
        %v586 = vunpack.c.l.b16 %v346
        %v587 = vunpack.c.h.b16 %v346
        %v588 = vunpack.c.l.b16 %v347
        %v589 = vunpack.c.h.b16 %v347
        %v590 = vunpack.c.l.b16 %v348
        %v591 = vunpack.c.h.b16 %v348
        %v592 = vunpack.c.l.b16 %v349
        %v593 = vunpack.c.h.b16 %v349
        %v594 = vunpack.c.l.b16 %v350
        %v595 = vunpack.c.h.b16 %v350
        %v596 = vunpack.c.l.b16 %v351
        %v597 = vunpack.c.h.b16 %v351
        %v598 = vunpack.c.l.b16 %v352
        %v599 = vunpack.c.h.b16 %v352
        %v600 = vunpack.c.l.b16 %v353
        %v601 = vunpack.c.h.b16 %v353
        %v602 = vunpack.c.l.b16 %v354
        %v603 = vunpack.c.h.b16 %v354
        %v604 = vunpack.c.l.b16 %v355
        %v605 = vunpack.c.h.b16 %v355
        %v606 = vunpack.c.l.b16 %v356
        %v607 = vunpack.c.h.b16 %v356
        %v608 = vunpack.c.l.b16 %v357
        %v609 = vunpack.c.h.b16 %v357
        %v610 = vunpack.c.l.b16 %v358
        %v611 = vunpack.c.h.b16 %v358
        %v612 = vunpack.c.l.b16 %v359
        %v613 = vunpack.c.h.b16 %v359
        %v614 = vunpack.c.l.b16 %v360
        %v615 = vunpack.c.h.b16 %v360
        %v616 = vunpack.c.l.b16 %v361
        %v617 = vunpack.c.h.b16 %v361
        %v618 = vunpack.c.l.b16 %v362
        %v619 = vunpack.c.h.b16 %v362
        %v620 = vunpack.c.l.b16 %v363
        %v621 = vunpack.c.h.b16 %v363
        %v622 = vunpack.c.l.b16 %v364
        %v623 = vunpack.c.h.b16 %v364
        %v624 = vunpack.c.l.b16 %v365
        %v625 = vunpack.c.h.b16 %v365
        %v626 = vunpack.c.l.b16 %v366
        %v627 = vunpack.c.h.b16 %v366
        %v628 = vunpack.c.l.b16 %v367
        %v629 = vunpack.c.h.b16 %v367
        %v630 = vunpack.c.l.b16 %v368
        %v631 = vunpack.c.h.b16 %v368
        %v632 = vunpack.c.l.b16 %v369
        %v633 = vunpack.c.h.b16 %v369
        %v634 = vunpack.c.l.b16 %v370
        %v635 = vunpack.c.h.b16 %v370
        %v636 = vunpack.c.l.b16 %v371
        %v637 = vunpack.c.h.b16 %v371
        %v638 = vunpack.c.l.b16 %v372
        %v639 = vunpack.c.h.b16 %v372
        %v640 = vunpack.c.l.b16 %v373
        %v641 = vunpack.c.h.b16 %v373
        %v642 = vunpack.c.l.b16 %v374
        %v643 = vunpack.c.h.b16 %v374
        %v644 = vunpack.c.l.b16 %v375
        %v645 = vunpack.c.h.b16 %v375
        %v646 = vunpack.c.l.b16 %v376
        %v647 = vunpack.c.h.b16 %v376
        %v648 = vunpack.c.l.b16 %v377
        %v649 = vunpack.c.h.b16 %v377
        %v650 = vunpack.c.l.b16 %v378
        %v651 = vunpack.c.h.b16 %v378
        %v652 = vunpack.c.l.b16 %v379
        %v653 = vunpack.c.h.b16 %v379
        %v654 = vunpack.c.l.b16 %v380
        %v655 = vunpack.c.h.b16 %v380
        %v656 = vunpack.c.l.b16 %v381
        %v657 = vunpack.c.h.b16 %v381
        %v658 = vunpack.c.l.b16 %v382
        %v659 = vunpack.c.h.b16 %v382
        %v660 = vunpack.c.l.b16 %v383
        %v661 = vunpack.c.h.b16 %v383
        %v662 = vunpack.c.l.b16 %v384
        %v663 = vunpack.c.h.b16 %v384
        %v664 = vunpack.c.l.b16 %v385
        %v665 = vunpack.c.h.b16 %v385
        %v666 = vunpack.c.l.b16 %v386
        %v667 = vunpack.c.h.b16 %v386
        %v668 = vunpack.c.l.b16 %v387
        %v669 = vunpack.c.h.b16 %v387
        %v670 = vunpack.c.l.b16 %v388
        %v671 = vunpack.c.h.b16 %v388
        %v672 = vunpack.c.l.b16 %v389
        %v673 = vunpack.c.h.b16 %v389
        %v674 = vunpack.c.l.b16 %v390
        %v675 = vunpack.c.h.b16 %v390
        %v676 = vunpack.c.l.b16 %v391
        %v677 = vunpack.c.h.b16 %v391
        %v678 = vunpack.c.l.b16 %v392
        %v679 = vunpack.c.h.b16 %v392
        %v680 = vunpack.c.l.b16 %v393
        %v681 = vunpack.c.h.b16 %v393
        %v682 = vunpack.c.l.b16 %v394
        %v683 = vunpack.c.h.b16 %v394
        %v684 = vunpack.c.l.b16 %v395
        %v685 = vunpack.c.h.b16 %v395
        %v686 = vunpack.c.l.b16 %v396
        %v687 = vunpack.c.h.b16 %v396
        %v688 = vunpack.c.l.b16 %v397
        %v689 = vunpack.c.h.b16 %v397
        %v690 = vunpack.c.l.b16 %v398
        %v691 = vunpack.c.h.b16 %v398
        %v692 = vunpack.c.l.b16 %v399
        %v693 = vunpack.c.h.b16 %v399
        %v694 = vunpack.c.l.b16 %v400
        %v695 = vunpack.c.h.b16 %v400
        %v696 = vunpack.c.l.b16 %v401
        %v697 = vunpack.c.h.b16 %v401
        %v698 = vunpack.c.l.b16 %v402
        %v699 = vunpack.c.h.b16 %v402
        %v700 = vunpack.c.l.b16 %v403
        %v701 = vunpack.c.h.b16 %v403
        %v702 = vpack.c.b16 %v516, %v510
        %v703 = vpack.c.b16 %v517, %v511
        %v704 = vpack.c.b16 %v518, %v512
        %v705 = vpack.c.b16 %v519, %v513
        %v706 = vpack.c.b16 %v520, %v514
        %v707 = vpack.c.b16 %v521, %v515
        %v708 = vpack.c.b16 %v528, %v522
        %v709 = vpack.c.b16 %v529, %v523
        %v710 = vpack.c.b16 %v530, %v524
        %v711 = vpack.c.b16 %v531, %v525
        %v712 = vpack.c.b16 %v532, %v526
        %v713 = vpack.c.b16 %v533, %v527
        %v714 = vpack.c.b16 %v540, %v534
        %v715 = vpack.c.b16 %v541, %v535
        %v716 = vpack.c.b16 %v542, %v536
        %v717 = vpack.c.b16 %v543, %v537
        %v718 = vpack.c.b16 %v544, %v538
        %v719 = vpack.c.b16 %v545, %v539
        %v720 = vpack.c.b16 %v552, %v546
        %v721 = vpack.c.b16 %v553, %v547
        %v722 = vpack.c.b16 %v554, %v548
        %v723 = vpack.c.b16 %v555, %v549
        %v724 = vpack.c.b16 %v556, %v550
        %v725 = vpack.c.b16 %v557, %v551
        %v726 = vpack.c.b16 %v564, %v558
        %v727 = vpack.c.b16 %v565, %v559
        %v728 = vpack.c.b16 %v566, %v560
        %v729 = vpack.c.b16 %v567, %v561
        %v730 = vpack.c.b16 %v568, %v562
        %v731 = vpack.c.b16 %v569, %v563
        %v732 = vpack.c.b16 %v576, %v570
        %v733 = vpack.c.b16 %v577, %v571
        %v734 = vpack.c.b16 %v578, %v572
        %v735 = vpack.c.b16 %v579, %v573
        %v736 = vpack.c.b16 %v580, %v574
        %v737 = vpack.c.b16 %v581, %v575
        %v738 = vpack.c.b16 %v588, %v582
        %v739 = vpack.c.b16 %v589, %v583
        %v740 = vpack.c.b16 %v590, %v584
        %v741 = vpack.c.b16 %v591, %v585
        %v742 = vpack.c.b16 %v592, %v586
        %v743 = vpack.c.b16 %v593, %v587
        %v744 = vpack.c.b16 %v600, %v594
        %v745 = vpack.c.b16 %v601, %v595
        %v746 = vpack.c.b16 %v602, %v596
        %v747 = vpack.c.b16 %v603, %v597
        %v748 = vpack.c.b16 %v604, %v598
        %v749 = vpack.c.b16 %v605, %v599
        %v750 = vpack.c.b16 %v612, %v606
        %v751 = vpack.c.b16 %v613, %v607
        %v752 = vpack.c.b16 %v614, %v608
        %v753 = vpack.c.b16 %v615, %v609
        %v754 = vpack.c.b16 %v616, %v610
        %v755 = vpack.c.b16 %v617, %v611
        %v756 = vpack.c.b16 %v624, %v618
        %v757 = vpack.c.b16 %v625, %v619
        %v758 = vpack.c.b16 %v626, %v620
        %v759 = vpack.c.b16 %v627, %v621
        %v760 = vpack.c.b16 %v628, %v622
        %v761 = vpack.c.b16 %v629, %v623
        %v762 = vpack.c.b16 %v636, %v630
        %v763 = vpack.c.b16 %v637, %v631
        %v764 = vpack.c.b16 %v638, %v632
        %v765 = vpack.c.b16 %v639, %v633
        %v766 = vpack.c.b16 %v640, %v634
        %v767 = vpack.c.b16 %v641, %v635
        %v768 = vpack.c.b16 %v648, %v642
        %v769 = vpack.c.b16 %v649, %v643
        %v770 = vpack.c.b16 %v650, %v644
        %v771 = vpack.c.b16 %v651, %v645
        %v772 = vpack.c.b16 %v652, %v646
        %v773 = vpack.c.b16 %v653, %v647
        %v774 = vpack.c.b16 %v660, %v654
        %v775 = vpack.c.b16 %v661, %v655
        %v776 = vpack.c.b16 %v662, %v656
        %v777 = vpack.c.b16 %v663, %v657
        %v778 = vpack.c.b16 %v664, %v658
        %v779 = vpack.c.b16 %v665, %v659
        %v780 = vpack.c.b16 %v672, %v666
        %v781 = vpack.c.b16 %v673, %v667
        %v782 = vpack.c.b16 %v674, %v668
        %v783 = vpack.c.b16 %v675, %v669
        %v784 = vpack.c.b16 %v676, %v670
        %v785 = vpack.c.b16 %v677, %v671
        %v786 = vpack.c.b16 %v684, %v678
        %v787 = vpack.c.b16 %v685, %v679
        %v788 = vpack.c.b16 %v686, %v680
        %v789 = vpack.c.b16 %v687, %v681
        %v790 = vpack.c.b16 %v688, %v682
        %v791 = vpack.c.b16 %v689, %v683
        %v792 = vpack.c.b16 %v696, %v690
        %v793 = vpack.c.b16 %v697, %v691
        %v794 = vpack.c.b16 %v698, %v692
        %v795 = vpack.c.b16 %v699, %v693
        %v796 = vpack.c.b16 %v700, %v694
        %v797 = vpack.c.b16 %v701, %v695
        %894 = vmatprep.subr.bf16.mxu0 %v745
        %895 = vmatpush1.bf16.msra.mxu0 %v744
        %896 = vmatprep.subr.bf16.mxu0 %v739
        %897 = vmatpush1.bf16.msra.mxu0 %v738
        %898 = vmatprep.subr.bf16.mxu0 %v733
        %899 = vmatpush1.bf16.msra.mxu0 %v732
        %900 = vmatprep.subr.bf16.mxu0 %v727
        %901 = vmatpush1.bf16.msra.mxu0 %v726
        %902 = vmatprep.subr.bf16.mxu0 %v721
        %903 = vmatpush1.bf16.msra.mxu0 %v720
        %904 = vmatprep.subr.bf16.mxu0 %v715
        %905 = vmatpush1.bf16.msra.mxu0 %v714
        %906 = vmatprep.subr.bf16.mxu0 %v709
        %907 = vmatpush1.bf16.msra.mxu0 %v708
        %908 = vmatprep.subr.bf16.mxu0 %v703
        %909 = vmatpush1.bf16.msra.mxu0 %v702
        %910 = vmatprep.subr.bf16.mxu0 %v793
        %911 = vmatpush2.bf16.msra.mxu0 %v792
        %912 = vmatprep.subr.bf16.mxu0 %v787
        %913 = vmatpush2.bf16.msra.mxu0 %v786
        %914 = vmatprep.subr.bf16.mxu0 %v781
        %915 = vmatpush2.bf16.msra.mxu0 %v780
        %916 = vmatprep.subr.bf16.mxu0 %v775
        %917 = vmatpush2.bf16.msra.mxu0 %v774
        %918 = vmatprep.subr.bf16.mxu0 %v769
        %919 = vmatpush2.bf16.msra.mxu0 %v768
        %920 = vmatprep.subr.bf16.mxu0 %v763
        %921 = vmatpush2.bf16.msra.mxu0 %v762
        %922 = vmatprep.subr.bf16.mxu0 %v757
        %923 = vmatpush2.bf16.msra.mxu0 %v756
        %924 = vmatprep.subr.bf16.mxu0 %v751
        %925 = vmatpush2.bf16.msra.mxu0 %v750
        %926 = vmatprep.mubr.bf16.mxu0 %v411
        %927 = vmatmul.mubr.bf16.gmra.mxu0 %v410
        %v928 = vpop.f32.mrf.mxu0
        %v929 = vadd.f32 0.0, %v928
        %v930 = vpop.f32.mrf.mxu0
        %v931 = vadd.f32 0.0, %v930
        %v932 = vpop.f32.mrf.mxu0
        %v933 = vadd.f32 0.0, %v932
        %v934 = vpop.f32.mrf.mxu0
        %v935 = vadd.f32 0.0, %v934
        %936 = vdwg.mxu0
        %937 = vmatprep.subr.bf16.mxu0 %v747
        %938 = vmatpush1.bf16.msra.mxu0 %v746
        %939 = vmatprep.subr.bf16.mxu0 %v741
        %940 = vmatpush1.bf16.msra.mxu0 %v740
        %941 = vmatprep.subr.bf16.mxu0 %v735
        %942 = vmatpush1.bf16.msra.mxu0 %v734
        %943 = vmatprep.subr.bf16.mxu0 %v729
        %944 = vmatpush1.bf16.msra.mxu0 %v728
        %945 = vmatprep.subr.bf16.mxu0 %v723
        %946 = vmatpush1.bf16.msra.mxu0 %v722
        %947 = vmatprep.subr.bf16.mxu0 %v717
        %948 = vmatpush1.bf16.msra.mxu0 %v716
        %949 = vmatprep.subr.bf16.mxu0 %v711
        %950 = vmatpush1.bf16.msra.mxu0 %v710
        %951 = vmatprep.subr.bf16.mxu0 %v705
        %952 = vmatpush1.bf16.msra.mxu0 %v704
        %953 = vmatprep.subr.bf16.mxu0 %v795
        %954 = vmatpush2.bf16.msra.mxu0 %v794
        %955 = vmatprep.subr.bf16.mxu0 %v789
        %956 = vmatpush2.bf16.msra.mxu0 %v788
        %957 = vmatprep.subr.bf16.mxu0 %v783
        %958 = vmatpush2.bf16.msra.mxu0 %v782
        %959 = vmatprep.subr.bf16.mxu0 %v777
        %960 = vmatpush2.bf16.msra.mxu0 %v776
        %961 = vmatprep.subr.bf16.mxu0 %v771
        %962 = vmatpush2.bf16.msra.mxu0 %v770
        %963 = vmatprep.subr.bf16.mxu0 %v765
        %964 = vmatpush2.bf16.msra.mxu0 %v764
        %965 = vmatprep.subr.bf16.mxu0 %v759
        %966 = vmatpush2.bf16.msra.mxu0 %v758
        %967 = vmatprep.subr.bf16.mxu0 %v753
        %968 = vmatpush2.bf16.msra.mxu0 %v752
        %969 = vmatprep.mubr.bf16.mxu0 %v411
        %970 = vmatmul.mubr.bf16.gmra.mxu0 %v410
        %v971 = vpop.f32.mrf.mxu0
        %v972 = vadd.f32 0.0, %v971
        %v973 = vpop.f32.mrf.mxu0
        %v974 = vadd.f32 0.0, %v973
        %v975 = vpop.f32.mrf.mxu0
        %v976 = vadd.f32 0.0, %v975
        %v977 = vpop.f32.mrf.mxu0
        %v978 = vadd.f32 0.0, %v977
        %979 = vdwg.mxu0
        %980 = vmatprep.subr.bf16.mxu0 %v749
        %981 = vmatpush1.bf16.msra.mxu0 %v748
        %982 = vmatprep.subr.bf16.mxu0 %v743
        %983 = vmatpush1.bf16.msra.mxu0 %v742
        %984 = vmatprep.subr.bf16.mxu0 %v737
        %985 = vmatpush1.bf16.msra.mxu0 %v736
        %986 = vmatprep.subr.bf16.mxu0 %v731
        %987 = vmatpush1.bf16.msra.mxu0 %v730
        %988 = vmatprep.subr.bf16.mxu0 %v725
        %989 = vmatpush1.bf16.msra.mxu0 %v724
        %990 = vmatprep.subr.bf16.mxu0 %v719
        %991 = vmatpush1.bf16.msra.mxu0 %v718
        %992 = vmatprep.subr.bf16.mxu0 %v713
        %993 = vmatpush1.bf16.msra.mxu0 %v712
        %994 = vmatprep.subr.bf16.mxu0 %v707
        %995 = vmatpush1.bf16.msra.mxu0 %v706
        %996 = vmatprep.subr.bf16.mxu0 %v797
        %997 = vmatpush2.bf16.msra.mxu0 %v796
        %998 = vmatprep.subr.bf16.mxu0 %v791
        %999 = vmatpush2.bf16.msra.mxu0 %v790
        %1000 = vmatprep.subr.bf16.mxu0 %v785
        %1001 = vmatpush2.bf16.msra.mxu0 %v784
        %1002 = vmatprep.subr.bf16.mxu0 %v779
        %1003 = vmatpush2.bf16.msra.mxu0 %v778
        %1004 = vmatprep.subr.bf16.mxu0 %v773
        %1005 = vmatpush2.bf16.msra.mxu0 %v772
        %1006 = vmatprep.subr.bf16.mxu0 %v767
        %1007 = vmatpush2.bf16.msra.mxu0 %v766
        %1008 = vmatprep.subr.bf16.mxu0 %v761
        %1009 = vmatpush2.bf16.msra.mxu0 %v760
        %1010 = vmatprep.subr.bf16.mxu0 %v755
        %1011 = vmatpush2.bf16.msra.mxu0 %v754
        %1012 = vmatprep.mubr.bf16.mxu0 %v411
        %1013 = vmatmul.mubr.bf16.gmra.mxu0 %v410
        %v1014 = vpop.f32.mrf.mxu0
        %v1015 = vadd.f32 0.0, %v1014
        %v1016 = vpop.f32.mrf.mxu0
        %v1017 = vadd.f32 0.0, %v1016
        %v1018 = vpop.f32.mrf.mxu0
        %v1019 = vadd.f32 0.0, %v1018
        %v1020 = vpop.f32.mrf.mxu0
        %v1021 = vadd.f32 0.0, %v1020
        %1022 = vdwg.mxu0
        %v1023 = vld [vmem:[%s3] sm:$0x3]
        %v1025 = vlaneseq
        %v1026 = vshrl.u32 %v1025, 7
        %v1027 = vsub.s32 0, %v1026
        %v1028 = vrot.slane %v1023, %v1027
        %v1029 = vlaneseq
        %v1030 = vshrl.u32 %v1029, 7
        %v1031 = vsub.s32 1, %v1030
        %v1032 = vrot.slane %v1023, %v1031
        %v1035 = vadd.f32 %v1028, %v972
        %v1036 = vadd.f32 %v1032, %v974
        %v1037 = vadd.f32 %v1028, %v976
        %v1038 = vadd.f32 %v1032, %v978
        %v1039 = vrot.slane %v929, 7
        %v1040 = vrot.slane %v931, 7
        %v1041 = vrot.slane %v933, 7
        %v1042 = vrot.slane %v935, 7
        %vm1043 = vcmp.lt.s32.totalorder %v278, 1
        %v1044 = vsel %vm1043, %v1039, %v1041
        %v1045 = vsel %vm1043, %v1040, %v1042
        %v1046 = vsel %vm1043, %v1041, %v1039
        %v1047 = vsel %vm1043, %v1042, %v1040
        %v1048 = vsel %vm304, 1, 0
        %v1049 = vsel %vm305, 1, 0
        %vm1050 = vcmp.eq.s32.totalorder %v1048, 1
        %vm1051 = vcmp.eq.s32.totalorder %v1049, 1
        %v1052 = vsel %vm1050, %v1046, 0.0
        %v1053 = vsel %vm1050, %v1047, 0.0
        %v1054 = vsel %vm1051, %v1044, 0.0
        %v1055 = vsel %vm1051, %v1045, 0.0
        %v1056 = vadd.f32 %v1035, %v1052
        %v1057 = vadd.f32 %v1036, %v1053
        %v1058 = vadd.f32 %v1037, %v1054
        %v1059 = vadd.f32 %v1038, %v1055
        %v1060 = vrot.slane %v1015, 1
        %v1061 = vrot.slane %v1017, 1
        %v1062 = vrot.slane %v1019, 1
        %v1063 = vrot.slane %v1021, 1
        %vm1064 = vcmp.lt.s32.totalorder %v278, 7
        %v1065 = vsel %vm1064, %v1060, %v1062
        %v1066 = vsel %vm1064, %v1061, %v1063
        %v1067 = vsel %vm1064, %v1062, %v1060
        %v1068 = vsel %vm1064, %v1063, %v1061
        %v1069 = vsel %vm306, 1, 0
        %v1070 = vsel %vm307, 1, 0
        %vm1071 = vcmp.eq.s32.totalorder %v1069, 1
        %vm1072 = vcmp.eq.s32.totalorder %v1070, 1
        %v1073 = vsel %vm1071, %v1065, 0.0
        %v1074 = vsel %vm1071, %v1066, 0.0
        %v1075 = vsel %vm1072, %v1067, 0.0
        %v1076 = vsel %vm1072, %v1068, 0.0
        %v1077 = vadd.f32 %v1056, %v1073
        %v1078 = vadd.f32 %v1057, %v1074
        %v1079 = vadd.f32 %v1058, %v1075
        %v1080 = vadd.f32 %v1059, %v1076
        %v1081 = vmax.f32 %v1077, 0.0
        %v1082 = vmax.f32 %v1078, 0.0
        %v1083 = vmax.f32 %v1079, 0.0
        %v1084 = vmax.f32 %v1080, 0.0
        %v1085 = vpack.c.bf16 %v1083, %v1081
        %v1086 = vpack.c.bf16 %v1084, %v1082
        %v1087 = vld [vmem:[#allocation7] sm:$0xff]
        %v1088 = vld [vmem:[#allocation7 + $0x8] sm:$0xff]
        %v1089 = vld [vmem:[#allocation7 + $0x10] sm:$0xff]
        %v1090 = vld [vmem:[#allocation7 + $0x18] sm:$0xff]
        %v1091 = vld [vmem:[#allocation7 + $0x20] sm:$0xff]
        %v1092 = vld [vmem:[#allocation7 + $0x28] sm:$0xff]
        %v1093 = vld [vmem:[#allocation7 + $0x30] sm:$0xff]
        %v1094 = vld [vmem:[#allocation7 + $0x38] sm:$0xff]
        %v1095 = vld [vmem:[#allocation7 + $0x40] sm:$0xff]
        %v1096 = vld [vmem:[#allocation7 + $0x48] sm:$0xff]
        %v1097 = vld [vmem:[#allocation7 + $0x50] sm:$0xff]
        %v1098 = vld [vmem:[#allocation7 + $0x58] sm:$0xff]
        %v1099 = vld [vmem:[#allocation7 + $0x60] sm:$0xff]
        %v1100 = vld [vmem:[#allocation7 + $0x68] sm:$0xff]
        %v1101 = vld [vmem:[#allocation7 + $0x70] sm:$0xff]
        %v1102 = vld [vmem:[#allocation7 + $0x78] sm:$0xff]
        %v1103 = vld [vmem:[#allocation7 + $0x80] sm:$0xff]
        %v1104 = vld [vmem:[#allocation7 + $0x88] sm:$0xff]
        %v1105 = vld [vmem:[#allocation7 + $0x90] sm:$0xff]
        %v1106 = vld [vmem:[#allocation7 + $0x98] sm:$0xff]
        %v1107 = vld [vmem:[#allocation7 + $0xa0] sm:$0xff]
        %v1108 = vld [vmem:[#allocation7 + $0xa8] sm:$0xff]
        %v1109 = vld [vmem:[#allocation7 + $0xb0] sm:$0xff]
        %v1110 = vld [vmem:[#allocation7 + $0xb8] sm:$0xff]
        %v1111 = vld [vmem:[#allocation7 + $0xc0] sm:$0xff]
        %v1112 = vld [vmem:[#allocation7 + $0xc8] sm:$0xff]
        %v1113 = vld [vmem:[#allocation7 + $0xd0] sm:$0xff]
        %v1114 = vld [vmem:[#allocation7 + $0xd8] sm:$0xff]
        %v1115 = vld [vmem:[#allocation7 + $0xe0] sm:$0xff]
        %v1116 = vld [vmem:[#allocation7 + $0xe8] sm:$0xff]
        %v1117 = vld [vmem:[#allocation7 + $0xf0] sm:$0xff]
        %v1118 = vld [vmem:[#allocation7 + $0xf8] sm:$0xff]
        %v1119 = vld [vmem:[#allocation7 + $0x100] sm:$0xff]
        %v1120 = vld [vmem:[#allocation7 + $0x108] sm:$0xff]
        %v1121 = vld [vmem:[#allocation7 + $0x110] sm:$0xff]
        %v1122 = vld [vmem:[#allocation7 + $0x118] sm:$0xff]
        %v1123 = vld [vmem:[#allocation7 + $0x120] sm:$0xff]
        %v1124 = vld [vmem:[#allocation7 + $0x128] sm:$0xff]
        %v1125 = vld [vmem:[#allocation7 + $0x130] sm:$0xff]
        %v1126 = vld [vmem:[#allocation7 + $0x138] sm:$0xff]
        %v1127 = vld [vmem:[#allocation7 + $0x140] sm:$0xff]
        %v1128 = vld [vmem:[#allocation7 + $0x148] sm:$0xff]
        %v1129 = vld [vmem:[#allocation7 + $0x150] sm:$0xff]
        %v1130 = vld [vmem:[#allocation7 + $0x158] sm:$0xff]
        %v1131 = vld [vmem:[#allocation7 + $0x160] sm:$0xff]
        %v1132 = vld [vmem:[#allocation7 + $0x168] sm:$0xff]
        %v1133 = vld [vmem:[#allocation7 + $0x170] sm:$0xff]
        %v1134 = vld [vmem:[#allocation7 + $0x178] sm:$0xff]
        %v1135 = vld [vmem:[#allocation7 + $0x180] sm:$0xff]
        %v1136 = vld [vmem:[#allocation7 + $0x188] sm:$0xff]
        %v1137 = vld [vmem:[#allocation7 + $0x190] sm:$0xff]
        %v1138 = vld [vmem:[#allocation7 + $0x198] sm:$0xff]
        %v1139 = vld [vmem:[#allocation7 + $0x1a0] sm:$0xff]
        %v1140 = vld [vmem:[#allocation7 + $0x1a8] sm:$0xff]
        %v1141 = vld [vmem:[#allocation7 + $0x1b0] sm:$0xff]
        %v1142 = vld [vmem:[#allocation7 + $0x1b8] sm:$0xff]
        %v1143 = vld [vmem:[#allocation7 + $0x1c0] sm:$0xff]
        %v1144 = vld [vmem:[#allocation7 + $0x1c8] sm:$0xff]
        %v1145 = vld [vmem:[#allocation7 + $0x1d0] sm:$0xff]
        %v1146 = vld [vmem:[#allocation7 + $0x1d8] sm:$0xff]
        %v1147 = vld [vmem:[#allocation7 + $0x1e0] sm:$0xff]
        %v1148 = vld [vmem:[#allocation7 + $0x1e8] sm:$0xff]
        %v1149 = vld [vmem:[#allocation7 + $0x1f0] sm:$0xff]
        %v1150 = vld [vmem:[#allocation7 + $0x1f8] sm:$0xff]
        %v1151 = vld [vmem:[#allocation7 + $0x200] sm:$0xff]
        %v1152 = vld [vmem:[#allocation7 + $0x208] sm:$0xff]
        %v1153 = vld [vmem:[#allocation7 + $0x210] sm:$0xff]
        %v1154 = vld [vmem:[#allocation7 + $0x218] sm:$0xff]
        %v1155 = vld [vmem:[#allocation7 + $0x220] sm:$0xff]
        %v1156 = vld [vmem:[#allocation7 + $0x228] sm:$0xff]
        %v1157 = vld [vmem:[#allocation7 + $0x230] sm:$0xff]
        %v1158 = vld [vmem:[#allocation7 + $0x238] sm:$0xff]
        %v1159 = vld [vmem:[#allocation7 + $0x240] sm:$0xff]
        %v1160 = vld [vmem:[#allocation7 + $0x248] sm:$0xff]
        %v1161 = vld [vmem:[#allocation7 + $0x250] sm:$0xff]
        %v1162 = vld [vmem:[#allocation7 + $0x258] sm:$0xff]
        %v1163 = vld [vmem:[#allocation7 + $0x260] sm:$0xff]
        %v1164 = vld [vmem:[#allocation7 + $0x268] sm:$0xff]
        %v1165 = vld [vmem:[#allocation7 + $0x270] sm:$0xff]
        %v1166 = vld [vmem:[#allocation7 + $0x278] sm:$0xff]
        %v1167 = vld [vmem:[#allocation7 + $0x280] sm:$0xff]
        %v1168 = vld [vmem:[#allocation7 + $0x288] sm:$0xff]
        %v1169 = vld [vmem:[#allocation7 + $0x290] sm:$0xff]
        %v1170 = vld [vmem:[#allocation7 + $0x298] sm:$0xff]
        %v1171 = vld [vmem:[#allocation7 + $0x2a0] sm:$0xff]
        %v1172 = vld [vmem:[#allocation7 + $0x2a8] sm:$0xff]
        %v1173 = vld [vmem:[#allocation7 + $0x2b0] sm:$0xff]
        %v1174 = vld [vmem:[#allocation7 + $0x2b8] sm:$0xff]
        %v1175 = vld [vmem:[#allocation7 + $0x2c0] sm:$0xff]
        %v1176 = vld [vmem:[#allocation7 + $0x2c8] sm:$0xff]
        %v1177 = vld [vmem:[#allocation7 + $0x2d0] sm:$0xff]
        %v1178 = vld [vmem:[#allocation7 + $0x2d8] sm:$0xff]
        %v1179 = vld [vmem:[#allocation7 + $0x2e0] sm:$0xff]
        %v1180 = vld [vmem:[#allocation7 + $0x2e8] sm:$0xff]
        %v1181 = vld [vmem:[#allocation7 + $0x2f0] sm:$0xff]
        %v1182 = vld [vmem:[#allocation7 + $0x2f8] sm:$0xff]
        %v1279 = vunpack.c.l.b16 %v1087
        %v1280 = vunpack.c.h.b16 %v1087
        %v1281 = vunpack.c.l.b16 %v1088
        %v1282 = vunpack.c.h.b16 %v1088
        %v1283 = vunpack.c.l.b16 %v1089
        %v1284 = vunpack.c.h.b16 %v1089
        %v1285 = vunpack.c.l.b16 %v1090
        %v1286 = vunpack.c.h.b16 %v1090
        %v1287 = vunpack.c.l.b16 %v1091
        %v1288 = vunpack.c.h.b16 %v1091
        %v1289 = vunpack.c.l.b16 %v1092
        %v1290 = vunpack.c.h.b16 %v1092
        %v1291 = vunpack.c.l.b16 %v1093
        %v1292 = vunpack.c.h.b16 %v1093
        %v1293 = vunpack.c.l.b16 %v1094
        %v1294 = vunpack.c.h.b16 %v1094
        %v1295 = vunpack.c.l.b16 %v1095
        %v1296 = vunpack.c.h.b16 %v1095
        %v1297 = vunpack.c.l.b16 %v1096
        %v1298 = vunpack.c.h.b16 %v1096
        %v1299 = vunpack.c.l.b16 %v1097
        %v1300 = vunpack.c.h.b16 %v1097
        %v1301 = vunpack.c.l.b16 %v1098
        %v1302 = vunpack.c.h.b16 %v1098
        %v1303 = vunpack.c.l.b16 %v1099
        %v1304 = vunpack.c.h.b16 %v1099
        %v1305 = vunpack.c.l.b16 %v1100
        %v1306 = vunpack.c.h.b16 %v1100
        %v1307 = vunpack.c.l.b16 %v1101
        %v1308 = vunpack.c.h.b16 %v1101
        %v1309 = vunpack.c.l.b16 %v1102
        %v1310 = vunpack.c.h.b16 %v1102
        %v1311 = vunpack.c.l.b16 %v1103
        %v1312 = vunpack.c.h.b16 %v1103
        %v1313 = vunpack.c.l.b16 %v1104
        %v1314 = vunpack.c.h.b16 %v1104
        %v1315 = vunpack.c.l.b16 %v1105
        %v1316 = vunpack.c.h.b16 %v1105
        %v1317 = vunpack.c.l.b16 %v1106
        %v1318 = vunpack.c.h.b16 %v1106
        %v1319 = vunpack.c.l.b16 %v1107
        %v1320 = vunpack.c.h.b16 %v1107
        %v1321 = vunpack.c.l.b16 %v1108
        %v1322 = vunpack.c.h.b16 %v1108
        %v1323 = vunpack.c.l.b16 %v1109
        %v1324 = vunpack.c.h.b16 %v1109
        %v1325 = vunpack.c.l.b16 %v1110
        %v1326 = vunpack.c.h.b16 %v1110
        %v1327 = vunpack.c.l.b16 %v1111
        %v1328 = vunpack.c.h.b16 %v1111
        %v1329 = vunpack.c.l.b16 %v1112
        %v1330 = vunpack.c.h.b16 %v1112
        %v1331 = vunpack.c.l.b16 %v1113
        %v1332 = vunpack.c.h.b16 %v1113
        %v1333 = vunpack.c.l.b16 %v1114
        %v1334 = vunpack.c.h.b16 %v1114
        %v1335 = vunpack.c.l.b16 %v1115
        %v1336 = vunpack.c.h.b16 %v1115
        %v1337 = vunpack.c.l.b16 %v1116
        %v1338 = vunpack.c.h.b16 %v1116
        %v1339 = vunpack.c.l.b16 %v1117
        %v1340 = vunpack.c.h.b16 %v1117
        %v1341 = vunpack.c.l.b16 %v1118
        %v1342 = vunpack.c.h.b16 %v1118
        %v1343 = vunpack.c.l.b16 %v1119
        %v1344 = vunpack.c.h.b16 %v1119
        %v1345 = vunpack.c.l.b16 %v1120
        %v1346 = vunpack.c.h.b16 %v1120
        %v1347 = vunpack.c.l.b16 %v1121
        %v1348 = vunpack.c.h.b16 %v1121
        %v1349 = vunpack.c.l.b16 %v1122
        %v1350 = vunpack.c.h.b16 %v1122
        %v1351 = vunpack.c.l.b16 %v1123
        %v1352 = vunpack.c.h.b16 %v1123
        %v1353 = vunpack.c.l.b16 %v1124
        %v1354 = vunpack.c.h.b16 %v1124
        %v1355 = vunpack.c.l.b16 %v1125
        %v1356 = vunpack.c.h.b16 %v1125
        %v1357 = vunpack.c.l.b16 %v1126
        %v1358 = vunpack.c.h.b16 %v1126
        %v1359 = vunpack.c.l.b16 %v1127
        %v1360 = vunpack.c.h.b16 %v1127
        %v1361 = vunpack.c.l.b16 %v1128
        %v1362 = vunpack.c.h.b16 %v1128
        %v1363 = vunpack.c.l.b16 %v1129
        %v1364 = vunpack.c.h.b16 %v1129
        %v1365 = vunpack.c.l.b16 %v1130
        %v1366 = vunpack.c.h.b16 %v1130
        %v1367 = vunpack.c.l.b16 %v1131
        %v1368 = vunpack.c.h.b16 %v1131
        %v1369 = vunpack.c.l.b16 %v1132
        %v1370 = vunpack.c.h.b16 %v1132
        %v1371 = vunpack.c.l.b16 %v1133
        %v1372 = vunpack.c.h.b16 %v1133
        %v1373 = vunpack.c.l.b16 %v1134
        %v1374 = vunpack.c.h.b16 %v1134
        %v1375 = vunpack.c.l.b16 %v1135
        %v1376 = vunpack.c.h.b16 %v1135
        %v1377 = vunpack.c.l.b16 %v1136
        %v1378 = vunpack.c.h.b16 %v1136
        %v1379 = vunpack.c.l.b16 %v1137
        %v1380 = vunpack.c.h.b16 %v1137
        %v1381 = vunpack.c.l.b16 %v1138
        %v1382 = vunpack.c.h.b16 %v1138
        %v1383 = vunpack.c.l.b16 %v1139
        %v1384 = vunpack.c.h.b16 %v1139
        %v1385 = vunpack.c.l.b16 %v1140
        %v1386 = vunpack.c.h.b16 %v1140
        %v1387 = vunpack.c.l.b16 %v1141
        %v1388 = vunpack.c.h.b16 %v1141
        %v1389 = vunpack.c.l.b16 %v1142
        %v1390 = vunpack.c.h.b16 %v1142
        %v1391 = vunpack.c.l.b16 %v1143
        %v1392 = vunpack.c.h.b16 %v1143
        %v1393 = vunpack.c.l.b16 %v1144
        %v1394 = vunpack.c.h.b16 %v1144
        %v1395 = vunpack.c.l.b16 %v1145
        %v1396 = vunpack.c.h.b16 %v1145
        %v1397 = vunpack.c.l.b16 %v1146
        %v1398 = vunpack.c.h.b16 %v1146
        %v1399 = vunpack.c.l.b16 %v1147
        %v1400 = vunpack.c.h.b16 %v1147
        %v1401 = vunpack.c.l.b16 %v1148
        %v1402 = vunpack.c.h.b16 %v1148
        %v1403 = vunpack.c.l.b16 %v1149
        %v1404 = vunpack.c.h.b16 %v1149
        %v1405 = vunpack.c.l.b16 %v1150
        %v1406 = vunpack.c.h.b16 %v1150
        %v1407 = vunpack.c.l.b16 %v1151
        %v1408 = vunpack.c.h.b16 %v1151
        %v1409 = vunpack.c.l.b16 %v1152
        %v1410 = vunpack.c.h.b16 %v1152
        %v1411 = vunpack.c.l.b16 %v1153
        %v1412 = vunpack.c.h.b16 %v1153
        %v1413 = vunpack.c.l.b16 %v1154
        %v1414 = vunpack.c.h.b16 %v1154
        %v1415 = vunpack.c.l.b16 %v1155
        %v1416 = vunpack.c.h.b16 %v1155
        %v1417 = vunpack.c.l.b16 %v1156
        %v1418 = vunpack.c.h.b16 %v1156
        %v1419 = vunpack.c.l.b16 %v1157
        %v1420 = vunpack.c.h.b16 %v1157
        %v1421 = vunpack.c.l.b16 %v1158
        %v1422 = vunpack.c.h.b16 %v1158
        %v1423 = vunpack.c.l.b16 %v1159
        %v1424 = vunpack.c.h.b16 %v1159
        %v1425 = vunpack.c.l.b16 %v1160
        %v1426 = vunpack.c.h.b16 %v1160
        %v1427 = vunpack.c.l.b16 %v1161
        %v1428 = vunpack.c.h.b16 %v1161
        %v1429 = vunpack.c.l.b16 %v1162
        %v1430 = vunpack.c.h.b16 %v1162
        %v1431 = vunpack.c.l.b16 %v1163
        %v1432 = vunpack.c.h.b16 %v1163
        %v1433 = vunpack.c.l.b16 %v1164
        %v1434 = vunpack.c.h.b16 %v1164
        %v1435 = vunpack.c.l.b16 %v1165
        %v1436 = vunpack.c.h.b16 %v1165
        %v1437 = vunpack.c.l.b16 %v1166
        %v1438 = vunpack.c.h.b16 %v1166
        %v1439 = vunpack.c.l.b16 %v1167
        %v1440 = vunpack.c.h.b16 %v1167
        %v1441 = vunpack.c.l.b16 %v1168
        %v1442 = vunpack.c.h.b16 %v1168
        %v1443 = vunpack.c.l.b16 %v1169
        %v1444 = vunpack.c.h.b16 %v1169
        %v1445 = vunpack.c.l.b16 %v1170
        %v1446 = vunpack.c.h.b16 %v1170
        %v1447 = vunpack.c.l.b16 %v1171
        %v1448 = vunpack.c.h.b16 %v1171
        %v1449 = vunpack.c.l.b16 %v1172
        %v1450 = vunpack.c.h.b16 %v1172
        %v1451 = vunpack.c.l.b16 %v1173
        %v1452 = vunpack.c.h.b16 %v1173
        %v1453 = vunpack.c.l.b16 %v1174
        %v1454 = vunpack.c.h.b16 %v1174
        %v1455 = vunpack.c.l.b16 %v1175
        %v1456 = vunpack.c.h.b16 %v1175
        %v1457 = vunpack.c.l.b16 %v1176
        %v1458 = vunpack.c.h.b16 %v1176
        %v1459 = vunpack.c.l.b16 %v1177
        %v1460 = vunpack.c.h.b16 %v1177
        %v1461 = vunpack.c.l.b16 %v1178
        %v1462 = vunpack.c.h.b16 %v1178
        %v1463 = vunpack.c.l.b16 %v1179
        %v1464 = vunpack.c.h.b16 %v1179
        %v1465 = vunpack.c.l.b16 %v1180
        %v1466 = vunpack.c.h.b16 %v1180
        %v1467 = vunpack.c.l.b16 %v1181
        %v1468 = vunpack.c.h.b16 %v1181
        %v1469 = vunpack.c.l.b16 %v1182
        %v1470 = vunpack.c.h.b16 %v1182
        %v1471 = vpack.c.b16 %v1285, %v1279
        %v1472 = vpack.c.b16 %v1286, %v1280
        %v1473 = vpack.c.b16 %v1287, %v1281
        %v1474 = vpack.c.b16 %v1288, %v1282
        %v1475 = vpack.c.b16 %v1289, %v1283
        %v1476 = vpack.c.b16 %v1290, %v1284
        %v1477 = vpack.c.b16 %v1297, %v1291
        %v1478 = vpack.c.b16 %v1298, %v1292
        %v1479 = vpack.c.b16 %v1299, %v1293
        %v1480 = vpack.c.b16 %v1300, %v1294
        %v1481 = vpack.c.b16 %v1301, %v1295
        %v1482 = vpack.c.b16 %v1302, %v1296
        %v1483 = vpack.c.b16 %v1309, %v1303
        %v1484 = vpack.c.b16 %v1310, %v1304
        %v1485 = vpack.c.b16 %v1311, %v1305
        %v1486 = vpack.c.b16 %v1312, %v1306
        %v1487 = vpack.c.b16 %v1313, %v1307
        %v1488 = vpack.c.b16 %v1314, %v1308
        %v1489 = vpack.c.b16 %v1321, %v1315
        %v1490 = vpack.c.b16 %v1322, %v1316
        %v1491 = vpack.c.b16 %v1323, %v1317
        %v1492 = vpack.c.b16 %v1324, %v1318
        %v1493 = vpack.c.b16 %v1325, %v1319
        %v1494 = vpack.c.b16 %v1326, %v1320
        %v1495 = vpack.c.b16 %v1333, %v1327
        %v1496 = vpack.c.b16 %v1334, %v1328
        %v1497 = vpack.c.b16 %v1335, %v1329
        %v1498 = vpack.c.b16 %v1336, %v1330
        %v1499 = vpack.c.b16 %v1337, %v1331
        %v1500 = vpack.c.b16 %v1338, %v1332
        %v1501 = vpack.c.b16 %v1345, %v1339
        %v1502 = vpack.c.b16 %v1346, %v1340
        %v1503 = vpack.c.b16 %v1347, %v1341
        %v1504 = vpack.c.b16 %v1348, %v1342
        %v1505 = vpack.c.b16 %v1349, %v1343
        %v1506 = vpack.c.b16 %v1350, %v1344
        %v1507 = vpack.c.b16 %v1357, %v1351
        %v1508 = vpack.c.b16 %v1358, %v1352
        %v1509 = vpack.c.b16 %v1359, %v1353
        %v1510 = vpack.c.b16 %v1360, %v1354
        %v1511 = vpack.c.b16 %v1361, %v1355
        %v1512 = vpack.c.b16 %v1362, %v1356
        %v1513 = vpack.c.b16 %v1369, %v1363
        %v1514 = vpack.c.b16 %v1370, %v1364
        %v1515 = vpack.c.b16 %v1371, %v1365
        %v1516 = vpack.c.b16 %v1372, %v1366
        %v1517 = vpack.c.b16 %v1373, %v1367
        %v1518 = vpack.c.b16 %v1374, %v1368
        %v1519 = vpack.c.b16 %v1381, %v1375
        %v1520 = vpack.c.b16 %v1382, %v1376
        %v1521 = vpack.c.b16 %v1383, %v1377
        %v1522 = vpack.c.b16 %v1384, %v1378
        %v1523 = vpack.c.b16 %v1385, %v1379
        %v1524 = vpack.c.b16 %v1386, %v1380
        %v1525 = vpack.c.b16 %v1393, %v1387
        %v1526 = vpack.c.b16 %v1394, %v1388
        %v1527 = vpack.c.b16 %v1395, %v1389
        %v1528 = vpack.c.b16 %v1396, %v1390
        %v1529 = vpack.c.b16 %v1397, %v1391
        %v1530 = vpack.c.b16 %v1398, %v1392
        %v1531 = vpack.c.b16 %v1405, %v1399
        %v1532 = vpack.c.b16 %v1406, %v1400
        %v1533 = vpack.c.b16 %v1407, %v1401
        %v1534 = vpack.c.b16 %v1408, %v1402
        %v1535 = vpack.c.b16 %v1409, %v1403
        %v1536 = vpack.c.b16 %v1410, %v1404
        %v1537 = vpack.c.b16 %v1417, %v1411
        %v1538 = vpack.c.b16 %v1418, %v1412
        %v1539 = vpack.c.b16 %v1419, %v1413
        %v1540 = vpack.c.b16 %v1420, %v1414
        %v1541 = vpack.c.b16 %v1421, %v1415
        %v1542 = vpack.c.b16 %v1422, %v1416
        %v1543 = vpack.c.b16 %v1429, %v1423
        %v1544 = vpack.c.b16 %v1430, %v1424
        %v1545 = vpack.c.b16 %v1431, %v1425
        %v1546 = vpack.c.b16 %v1432, %v1426
        %v1547 = vpack.c.b16 %v1433, %v1427
        %v1548 = vpack.c.b16 %v1434, %v1428
        %v1549 = vpack.c.b16 %v1441, %v1435
        %v1550 = vpack.c.b16 %v1442, %v1436
        %v1551 = vpack.c.b16 %v1443, %v1437
        %v1552 = vpack.c.b16 %v1444, %v1438
        %v1553 = vpack.c.b16 %v1445, %v1439
        %v1554 = vpack.c.b16 %v1446, %v1440
        %v1555 = vpack.c.b16 %v1453, %v1447
        %v1556 = vpack.c.b16 %v1454, %v1448
        %v1557 = vpack.c.b16 %v1455, %v1449
        %v1558 = vpack.c.b16 %v1456, %v1450
        %v1559 = vpack.c.b16 %v1457, %v1451
        %v1560 = vpack.c.b16 %v1458, %v1452
        %v1561 = vpack.c.b16 %v1465, %v1459
        %v1562 = vpack.c.b16 %v1466, %v1460
        %v1563 = vpack.c.b16 %v1467, %v1461
        %v1564 = vpack.c.b16 %v1468, %v1462
        %v1565 = vpack.c.b16 %v1469, %v1463
        %v1566 = vpack.c.b16 %v1470, %v1464
        %1663 = vmatprep.subr.bf16.mxu0 %v1514
        %1664 = vmatpush1.bf16.msra.mxu0 %v1513
        %1665 = vmatprep.subr.bf16.mxu0 %v1508
        %1666 = vmatpush1.bf16.msra.mxu0 %v1507
        %1667 = vmatprep.subr.bf16.mxu0 %v1502
        %1668 = vmatpush1.bf16.msra.mxu0 %v1501
        %1669 = vmatprep.subr.bf16.mxu0 %v1496
        %1670 = vmatpush1.bf16.msra.mxu0 %v1495
        %1671 = vmatprep.subr.bf16.mxu0 %v1490
        %1672 = vmatpush1.bf16.msra.mxu0 %v1489
        %1673 = vmatprep.subr.bf16.mxu0 %v1484
        %1674 = vmatpush1.bf16.msra.mxu0 %v1483
        %1675 = vmatprep.subr.bf16.mxu0 %v1478
        %1676 = vmatpush1.bf16.msra.mxu0 %v1477
        %1677 = vmatprep.subr.bf16.mxu0 %v1472
        %1678 = vmatpush1.bf16.msra.mxu0 %v1471
        %1679 = vmatprep.subr.bf16.mxu0 %v1562
        %1680 = vmatpush2.bf16.msra.mxu0 %v1561
        %1681 = vmatprep.subr.bf16.mxu0 %v1556
        %1682 = vmatpush2.bf16.msra.mxu0 %v1555
        %1683 = vmatprep.subr.bf16.mxu0 %v1550
        %1684 = vmatpush2.bf16.msra.mxu0 %v1549
        %1685 = vmatprep.subr.bf16.mxu0 %v1544
        %1686 = vmatpush2.bf16.msra.mxu0 %v1543
        %1687 = vmatprep.subr.bf16.mxu0 %v1538
        %1688 = vmatpush2.bf16.msra.mxu0 %v1537
        %1689 = vmatprep.subr.bf16.mxu0 %v1532
        %1690 = vmatpush2.bf16.msra.mxu0 %v1531
        %1691 = vmatprep.subr.bf16.mxu0 %v1526
        %1692 = vmatpush2.bf16.msra.mxu0 %v1525
        %1693 = vmatprep.subr.bf16.mxu0 %v1520
        %1694 = vmatpush2.bf16.msra.mxu0 %v1519
        %1695 = vmatprep.mubr.bf16.mxu0 %v1086
        %1696 = vmatmul.mubr.bf16.gmra.mxu0 %v1085
        %v1697 = vpop.f32.mrf.mxu0
        %v1698 = vadd.f32 0.0, %v1697
        %v1699 = vpop.f32.mrf.mxu0
        %v1700 = vadd.f32 0.0, %v1699
        %v1701 = vpop.f32.mrf.mxu0
        %v1702 = vadd.f32 0.0, %v1701
        %v1703 = vpop.f32.mrf.mxu0
        %v1704 = vadd.f32 0.0, %v1703
        %1705 = vdwg.mxu0
        %1706 = vmatprep.subr.bf16.mxu0 %v1516
        %1707 = vmatpush1.bf16.msra.mxu0 %v1515
        %1708 = vmatprep.subr.bf16.mxu0 %v1510
        %1709 = vmatpush1.bf16.msra.mxu0 %v1509
        %1710 = vmatprep.subr.bf16.mxu0 %v1504
        %1711 = vmatpush1.bf16.msra.mxu0 %v1503
        %1712 = vmatprep.subr.bf16.mxu0 %v1498
        %1713 = vmatpush1.bf16.msra.mxu0 %v1497
        %1714 = vmatprep.subr.bf16.mxu0 %v1492
        %1715 = vmatpush1.bf16.msra.mxu0 %v1491
        %1716 = vmatprep.subr.bf16.mxu0 %v1486
        %1717 = vmatpush1.bf16.msra.mxu0 %v1485
        %1718 = vmatprep.subr.bf16.mxu0 %v1480
        %1719 = vmatpush1.bf16.msra.mxu0 %v1479
        %1720 = vmatprep.subr.bf16.mxu0 %v1474
        %1721 = vmatpush1.bf16.msra.mxu0 %v1473
        %1722 = vmatprep.subr.bf16.mxu0 %v1564
        %1723 = vmatpush2.bf16.msra.mxu0 %v1563
        %1724 = vmatprep.subr.bf16.mxu0 %v1558
        %1725 = vmatpush2.bf16.msra.mxu0 %v1557
        %1726 = vmatprep.subr.bf16.mxu0 %v1552
        %1727 = vmatpush2.bf16.msra.mxu0 %v1551
        %1728 = vmatprep.subr.bf16.mxu0 %v1546
        %1729 = vmatpush2.bf16.msra.mxu0 %v1545
        %1730 = vmatprep.subr.bf16.mxu0 %v1540
        %1731 = vmatpush2.bf16.msra.mxu0 %v1539
        %1732 = vmatprep.subr.bf16.mxu0 %v1534
        %1733 = vmatpush2.bf16.msra.mxu0 %v1533
        %1734 = vmatprep.subr.bf16.mxu0 %v1528
        %1735 = vmatpush2.bf16.msra.mxu0 %v1527
        %1736 = vmatprep.subr.bf16.mxu0 %v1522
        %1737 = vmatpush2.bf16.msra.mxu0 %v1521
        %1738 = vmatprep.mubr.bf16.mxu0 %v1086
        %1739 = vmatmul.mubr.bf16.gmra.mxu0 %v1085
        %v1740 = vpop.f32.mrf.mxu0
        %v1741 = vadd.f32 0.0, %v1740
        %v1742 = vpop.f32.mrf.mxu0
        %v1743 = vadd.f32 0.0, %v1742
        %v1744 = vpop.f32.mrf.mxu0
        %v1745 = vadd.f32 0.0, %v1744
        %v1746 = vpop.f32.mrf.mxu0
        %v1747 = vadd.f32 0.0, %v1746
        %1748 = vdwg.mxu0
        %1749 = vmatprep.subr.bf16.mxu0 %v1518
        %1750 = vmatpush1.bf16.msra.mxu0 %v1517
        %1751 = vmatprep.subr.bf16.mxu0 %v1512
        %1752 = vmatpush1.bf16.msra.mxu0 %v1511
        %1753 = vmatprep.subr.bf16.mxu0 %v1506
        %1754 = vmatpush1.bf16.msra.mxu0 %v1505
        %1755 = vmatprep.subr.bf16.mxu0 %v1500
        %1756 = vmatpush1.bf16.msra.mxu0 %v1499
        %1757 = vmatprep.subr.bf16.mxu0 %v1494
        %1758 = vmatpush1.bf16.msra.mxu0 %v1493
        %1759 = vmatprep.subr.bf16.mxu0 %v1488
        %1760 = vmatpush1.bf16.msra.mxu0 %v1487
        %1761 = vmatprep.subr.bf16.mxu0 %v1482
        %1762 = vmatpush1.bf16.msra.mxu0 %v1481
        %1763 = vmatprep.subr.bf16.mxu0 %v1476
        %1764 = vmatpush1.bf16.msra.mxu0 %v1475
        %1765 = vmatprep.subr.bf16.mxu0 %v1566
        %1766 = vmatpush2.bf16.msra.mxu0 %v1565
        %1767 = vmatprep.subr.bf16.mxu0 %v1560
        %1768 = vmatpush2.bf16.msra.mxu0 %v1559
        %1769 = vmatprep.subr.bf16.mxu0 %v1554
        %1770 = vmatpush2.bf16.msra.mxu0 %v1553
        %1771 = vmatprep.subr.bf16.mxu0 %v1548
        %1772 = vmatpush2.bf16.msra.mxu0 %v1547
        %1773 = vmatprep.subr.bf16.mxu0 %v1542
        %1774 = vmatpush2.bf16.msra.mxu0 %v1541
        %1775 = vmatprep.subr.bf16.mxu0 %v1536
        %1776 = vmatpush2.bf16.msra.mxu0 %v1535
        %1777 = vmatprep.subr.bf16.mxu0 %v1530
        %1778 = vmatpush2.bf16.msra.mxu0 %v1529
        %1779 = vmatprep.subr.bf16.mxu0 %v1524
        %1780 = vmatpush2.bf16.msra.mxu0 %v1523
        %1781 = vmatprep.mubr.bf16.mxu0 %v1086
        %1782 = vmatmul.mubr.bf16.gmra.mxu0 %v1085
        %v1783 = vpop.f32.mrf.mxu0
        %v1784 = vadd.f32 0.0, %v1783
        %v1785 = vpop.f32.mrf.mxu0
        %v1786 = vadd.f32 0.0, %v1785
        %v1787 = vpop.f32.mrf.mxu0
        %v1788 = vadd.f32 0.0, %v1787
        %v1789 = vpop.f32.mrf.mxu0
        %v1790 = vadd.f32 0.0, %v1789
        %1791 = vdwg.mxu0
        %v1792 = vld [vmem:[%s4] sm:$0x3]
        %v1794 = vlaneseq
        %v1795 = vshrl.u32 %v1794, 7
        %v1796 = vsub.s32 0, %v1795
        %v1797 = vrot.slane %v1792, %v1796
        %v1798 = vlaneseq
        %v1799 = vshrl.u32 %v1798, 7
        %v1800 = vsub.s32 1, %v1799
        %v1801 = vrot.slane %v1792, %v1800
        %v1804 = vadd.f32 %v1797, %v1741
        %v1805 = vadd.f32 %v1801, %v1743
        %v1806 = vadd.f32 %v1797, %v1745
        %v1807 = vadd.f32 %v1801, %v1747
        %v1808 = vrot.slane %v1698, 7
        %v1809 = vrot.slane %v1700, 7
        %v1810 = vrot.slane %v1702, 7
        %v1811 = vrot.slane %v1704, 7
        %v1812 = vsel %vm1043, %v1808, %v1810
        %v1813 = vsel %vm1043, %v1809, %v1811
        %v1814 = vsel %vm1043, %v1810, %v1808
        %v1815 = vsel %vm1043, %v1811, %v1809
        %v1816 = vsel %vm1050, %v1814, 0.0
        %v1817 = vsel %vm1050, %v1815, 0.0
        %v1818 = vsel %vm1051, %v1812, 0.0
        %v1819 = vsel %vm1051, %v1813, 0.0
        %v1820 = vadd.f32 %v1804, %v1816
        %v1821 = vadd.f32 %v1805, %v1817
        %v1822 = vadd.f32 %v1806, %v1818
        %v1823 = vadd.f32 %v1807, %v1819
        %v1824 = vrot.slane %v1784, 1
        %v1825 = vrot.slane %v1786, 1
        %v1826 = vrot.slane %v1788, 1
        %v1827 = vrot.slane %v1790, 1
        %v1828 = vsel %vm1064, %v1824, %v1826
        %v1829 = vsel %vm1064, %v1825, %v1827
        %v1830 = vsel %vm1064, %v1826, %v1824
        %v1831 = vsel %vm1064, %v1827, %v1825
        %v1832 = vsel %vm1071, %v1828, 0.0
        %v1833 = vsel %vm1071, %v1829, 0.0
        %v1834 = vsel %vm1072, %v1830, 0.0
        %v1835 = vsel %vm1072, %v1831, 0.0
        %v1836 = vadd.f32 %v1820, %v1832
        %v1837 = vadd.f32 %v1821, %v1833
        %v1838 = vadd.f32 %v1822, %v1834
        %v1839 = vadd.f32 %v1823, %v1835
        %v1840 = vunpack.c.l.bf16 %v275
        %v1841 = vunpack.c.h.bf16 %v275
        %v1842 = vunpack.c.l.bf16 %v276
        %v1843 = vunpack.c.h.bf16 %v276
        %v1844 = vadd.f32 %v1836, %v1840
        %v1845 = vadd.f32 %v1837, %v1841
        %v1846 = vadd.f32 %v1838, %v1842
        %v1847 = vadd.f32 %v1839, %v1843
        %v1848 = vmax.f32 %v1844, 0.0
        %v1849 = vmax.f32 %v1845, 0.0
        %v1850 = vmax.f32 %v1846, 0.0
        %v1851 = vmax.f32 %v1847, 0.0
        %1852 = vst [vmem:[%s272] sm:$0xff] %v1848
        %1853 = vst [vmem:[%s272 + $0x8] sm:$0xff] %v1849
        %1854 = vst [vmem:[%s272 + $0x10] sm:$0xff] %v1850
        %1855 = vst [vmem:[%s272 + $0x18] sm:$0xff] %v1851
        %s1856 = sand.u32 %s141, 1
        %s1857 = scalar_lea.sflag [#allocation4], %s1856
        %s1858 = sand.u32 %s141, 1
        %s1859 = smul.addr %s1858, 32
        %s1860 = scalar_lea.vmem [#allocation8], %s1859
        // Predicated region
        $region53: #{tpu_custom_call.1} parent=39 // pred_check
          %p1861 = pneg %p151
        $region54: #{tpu_custom_call.1} parent=39 // pred_check_branch
          %1863 = sbr.rel (%p1861) target = $region56
        $region55: #{tpu_custom_call.1} parent=39 // pred_region
          %s1864 = smul.u32 2, %s23
          %s1866 = ssub.s32 512, 512
          %1867 = vsyncadd %s1857, %s1866
          %s1868 = smul.addr %s1864, 2
          %s1869 = smul.addr %s1868, 128
          %s1870 = scalar_lea.hbm %s5, %s1869
          %s1871 = sshll.u32 %s1860, 4
          %s1872 = int_to_ptr.vmem [resolvable:$true] %s1871
          %1877 = dma.vmem_to_hbm [thread:$0]  %s1872, 512, %s1870, %s1857, 256, 256, 16
        $region56: #{tpu_custom_call.1} parent=39 // pred_fallthru
          _
      $region40: #{tpu_custom_call.1} parent=5 // pred_fallthru
        _
      %p1878 = scmp.le.s32.totalorder 2, %s18
      // Predicated region
      $region57: #{tpu_custom_call.1} parent=5 // pred_check
        %p1879 = pneg %p1878
      $region58: #{tpu_custom_call.1} parent=5 // pred_check_branch
        %1881 = sbr.rel (%p1879) target = $region60
      $region59: #{tpu_custom_call.1} parent=5 // pred_region
        %s1882 = ssub.s32 %s18, 2
        // Predicated region
        $region61: #{tpu_custom_call.1} parent=59 // pred_check
          %p1883 = pneg %p157
        $region62: #{tpu_custom_call.1} parent=59 // pred_check_branch
          %1885 = sbr.rel (%p1883) target = $region64
        $region63: #{tpu_custom_call.1} parent=59 // pred_region
          %s1886 = sand.u32 %s142, 1
          %s1887 = scalar_lea.sflag [#allocation4], %s1886
          %s1888 = sand.u32 %s142, 1
          %s1889 = smul.addr %s1888, 32
          %s1890 = scalar_lea.vmem [#allocation8], %s1889
          %1891 = dma.done %s1887, 512
        $region64: #{tpu_custom_call.1} parent=59 // pred_fallthru
          _
      $region60: #{tpu_custom_call.1} parent=5 // pred_fallthru
        _
    $region6: #{tpu_custom_call.1} parent=1 // loop_footer
      %s22 = sadd.s32 1, %s18
    $region7: #{tpu_custom_call.1} parent=1 // loop_footer_branch
      %17 = sbr.rel target = $region3
    $region8: #{tpu_custom_call.1} parent=1 // loop_exit
      _
    %1892 = vsyncpa [#allocation3], 1
    %s1893 = scalar_lea.sflag [#allocation3], 1
    %1894 = vsyncpa %s1893, 1
    %1895 = vsyncpa [#allocation6], 1
    %1896 = vsyncpa [#allocation4], 1
    %s1897 = scalar_lea.sflag [#allocation4], 1
    %1898 = vsyncpa %s1897, 1

</llo_original>
